<compile_context>
chip_gen: v5e
topology: v5e:2x2
jax: 0.10.0
libtpu: 0.0.40
codegen_flags: <defaults>
</compile_context>

<pallas_src>
import functools
import math

import jax
import jax.numpy as jnp
from jax.experimental import pallas as pl
from jax.experimental.pallas import tpu as pltpu


# ----------------------------------------------------------------------------
# Kernels
# ----------------------------------------------------------------------------
def _ntk_heads_kernel(x_ref, j_ref, w_ref, b_ref, o_ref, jo_ref, *, scale):
    """Fused avg-pool + NTK linear for logits and jvp heads.

    x_ref, j_ref : (TN, C, HW)  NCHW activations (C on sublanes, HW on lanes)
    w_ref        : (C, Kp)      fc weight, transposed + zero-padded to Kp lanes
    b_ref        : (1, Kp)      fc bias (f32), zero-padded
    o_ref        : (TN, Kp)     logits (bias added)
    jo_ref       : (TN, Kp)     jvp output (no bias)
    """
    tn = x_ref.shape[0]
    # AdaptiveAvgPool2d(1) + flatten(1) + NTK 1/sqrt(C) folded into one scale:
    # lane-axis sum over HW (XLU), f32 accumulation, one multiply per tile.
    px = jnp.sum(x_ref[...], axis=-1, dtype=jnp.float32) * scale      # (TN, C)
    pj = jnp.sum(j_ref[...], axis=-1, dtype=jnp.float32) * scale      # (TN, C)
    w = w_ref[...]                                                     # no upcast
    if tn % 8 == 0:
        # Sublane-aligned: one stacked MXU dot for both heads.
        p = jnp.concatenate([px, pj], axis=0)                         # (2TN, C)
        y = jnp.dot(p, w, preferred_element_type=jnp.float32)         # (2TN, Kp)
        logits = y[:tn]
        jvp = y[tn:]
    else:
        logits = jnp.dot(px, w, preferred_element_type=jnp.float32)
        jvp = jnp.dot(pj, w, preferred_element_type=jnp.float32)
    o_ref[...] = (logits + b_ref[...]).astype(o_ref.dtype)
    jo_ref[...] = jvp.astype(jo_ref.dtype)


def _ntk_logits_kernel(x_ref, w_ref, b_ref, o_ref, *, scale):
    """Single-head variant (jvp is None)."""
    px = jnp.sum(x_ref[...], axis=-1, dtype=jnp.float32) * scale      # (TN, C)
    o_ref[...] = (jnp.dot(px, w_ref[...], preferred_element_type=jnp.float32)
                  + b_ref[...]).astype(o_ref.dtype)


# ----------------------------------------------------------------------------
# Tiling helpers
# ----------------------------------------------------------------------------
def _vmem_limit_bytes():
    """Generation-aware scoped-VMEM limit (v7x: 64 MiB phys, v5e/v6e: 128)."""
    try:
        phys = pltpu.get_tpu_info().vmem_capacity_bytes
    except Exception:
        phys = 64 * 1024 * 1024          # conservative fallback (v7x floor)
    # Leave headroom for compiler-internal scratch; cap at ~100 MiB on 128 MiB
    # parts, ~48 MiB on v7x's 64 MiB parts.
    return max(32 * 1024 * 1024, min(phys - 16 * 1024 * 1024, 100 * 1024 * 1024))


def _choose_tn(n, c, hw, act_itemsize, n_streams, n_heads, kp, w_itemsize,
               vmem_limit):
    """Pick a batch tile so ALL double-buffered blocks fit the VMEM budget."""
    # Lane padding: a (TN, C, HW) tile occupies full 128-lane rows even if
    # HW < 128.
    lanes = ((hw + 127) // 128) * 128
    # Per batch row: double-buffered activation inputs per stream,
    # double-buffered lane-dense f32 outputs per head, f32 temporaries
    # (pooled tiles + stacked operand + dot result).
    act_per_row = n_streams * 2 * c * lanes * act_itemsize
    out_per_row = n_heads * 2 * kp * 4
    tmp_per_row = n_streams * 2 * c * 4 + n_heads * kp * 4
    per_row = act_per_row + out_per_row + tmp_per_row
    # Resident operands (weight + bias, double-buffered by default) + slack.
    fixed = 2 * c * kp * w_itemsize + 2 * kp * 4 + (2 << 20)
    budget = max(vmem_limit - fixed, 1 << 20)

    tn = budget // per_row
    tn = max(8, min(tn, 512, n))
    # Keep >=4 grid steps when the batch allows it: feeds both v7x
    # TensorCores via the "parallel" axis and amortizes pipeline ramp/drain.
    min_steps = 4
    if n >= min_steps * 8:
        tn = min(tn, max(8, n // min_steps))
    if tn >= n:
        return n                          # block may equal the full batch dim
    return max(8, (tn // 8) * 8)          # otherwise TN must be a multiple of 8


# ----------------------------------------------------------------------------
# Public forward
# ----------------------------------------------------------------------------
def ntk_classifier_forward(x_nchw, weight, bias, jvp_nchw=None):
    """Forward of NTKClassifier.

    x_nchw  : (N, 512, H, W)  activations, NCHW (PyTorch layout)
    weight  : (nclasses, 512) fc weight (PyTorch layout)
    bias    : (nclasses,)     fc bias
    jvp_nchw: optional (N, 512, H, W)

    Returns (logits, jvp_out) exactly like the PyTorch module.
    """
    n, c, h, w = x_nchw.shape
    hw = h * w
    nclasses = weight.shape[0]

    # Free reshape only (contiguous): NO transpose of the big activations.
    x3 = x_nchw.reshape(n, c, hw)                                     # (N, C, HW)

    # Pad the class dim to a lane-dense multiple of 128; slice back afterwards.
    kp = ((nclasses + 127) // 128) * 128
    if kp == nclasses:
        w_t = weight.T
        b2 = bias.astype(jnp.float32).reshape(1, kp)
    else:
        w_t = jnp.zeros((c, kp), weight.dtype).at[:, :nclasses].set(weight.T)
        b2 = jnp.zeros((1, kp), jnp.float32).at[:, :nclasses].set(
            bias.astype(jnp.float32))

    # Fold mean(1/HW) and NTK 1/sqrt(C) into a single scale.
    scale = 1.0 / (hw * math.sqrt(c))

    act_itemsize = jnp.dtype(x_nchw.dtype).itemsize
    w_itemsize = jnp.dtype(weight.dtype).itemsize
    n_streams = 2 if jvp_nchw is not None else 1
    n_heads = n_streams
    vmem_limit = _vmem_limit_bytes()
    tn = _choose_tn(n, c, hw, act_itemsize, n_streams, n_heads, kp,
                    w_itemsize, vmem_limit)
    grid = (pl.cdiv(n, tn),)

    act_spec = pl.BlockSpec((tn, c, hw), lambda i: (i, 0, 0))
    w_spec = pl.BlockSpec((c, kp), lambda i: (0, 0))     # resident across grid
    b_spec = pl.BlockSpec((1, kp), lambda i: (0, 0))     # resident across grid
    out_spec = pl.BlockSpec((tn, kp), lambda i: (i, 0))

    cparams = pltpu.CompilerParams(
        dimension_semantics=("parallel",),
        vmem_limit_bytes=vmem_limit,
    )

    if jvp_nchw is not None:
        j3 = jvp_nchw.reshape(n, c, hw)                               # (N, C, HW)
        kernel = functools.partial(_ntk_heads_kernel, scale=scale)
        logits_p, jvp_p = pl.pallas_call(
            kernel,
            out_shape=(jax.ShapeDtypeStruct((n, kp), jnp.float32),
                       jax.ShapeDtypeStruct((n, kp), jnp.float32)),
            grid_spec=pl.GridSpec(
                grid=grid,
                in_specs=[act_spec, act_spec, w_spec, b_spec],
                out_specs=[out_spec, out_spec],
            ),
            compiler_params=cparams,
        )(x3, j3, w_t, b2)
        return logits_p[:, :nclasses], jvp_p[:, :nclasses]

    kernel = functools.partial(_ntk_logits_kernel, scale=scale)
    logits_p = pl.pallas_call(
        kernel,
        out_shape=jax.ShapeDtypeStruct((n, kp), jnp.float32),
        grid_spec=pl.GridSpec(
            grid=grid,
            in_specs=[act_spec, w_spec, b_spec],
            out_specs=out_spec,
        ),
        compiler_params=cparams,
    )(x3, w_t, b2)
    return logits_p[:, :nclasses], None


# ----------------------------------------------------------------------------
# Plain-JAX reference
# ----------------------------------------------------------------------------
def _reference(x_nchw, weight, bias, jvp_nchw=None):
    c = x_nchw.shape[1]
    pooled = jnp.mean(x_nchw.astype(jnp.float32), axis=(2, 3))
    logits = pooled @ weight.T.astype(jnp.float32) / jnp.sqrt(jnp.float32(c))
    logits = logits + bias.astype(jnp.float32)
    jvp_out = None
    if jvp_nchw is not None:
        jp = jnp.mean(jvp_nchw.astype(jnp.float32), axis=(2, 3))
        jvp_out = jp @ weight.T.astype(jnp.float32) / jnp.sqrt(jnp.float32(c))
    return logits, jvp_out


if __name__ == "__main__":
    # Small shapes consistent with the module: the fc layer fixes C=512.
    N, C, H, W = 2, 512, 8, 8
    NCLASSES = 10

    key = jax.random.PRNGKey(0)
    kx, kj, kw, kb = jax.random.split(key, 4)

    x = jax.random.normal(kx, (N, C, H, W), dtype=jnp.float32)
    jvp = jax.random.normal(kj, (N, C, H, W), dtype=jnp.float32)

    # NTK-parametrized weights: W ~ N(0, 1); nonzero bias to exercise the add.
    weight = jax.random.normal(kw, (NCLASSES, C), dtype=jnp.float32)
    bias = 0.1 * jax.random.normal(kb, (NCLASSES,), dtype=jnp.float32)

    # Fused two-head path.
    logits, jvp_out = ntk_classifier_forward(x, weight, bias, jvp)
    jax.block_until_ready(logits)
    jax.block_until_ready(jvp_out)

    # jvp=None path.
    logits_only, none_out = ntk_classifier_forward(x, weight, bias, None)
    jax.block_until_ready(logits_only)

    ref_logits, ref_jvp = _reference(x, weight, bias, jvp)
    assert logits.shape == (N, NCLASSES)
    assert jvp_out.shape == (N, NCLASSES)
    assert none_out is None
    assert jnp.allclose(logits, ref_logits, atol=1e-3, rtol=1e-3)
    assert jnp.allclose(jvp_out, ref_jvp, atol=1e-3, rtol=1e-3)
    assert jnp.allclose(logits_only, ref_logits, atol=1e-3, rtol=1e-3)

    print("KERNEL_OK")
</pallas_src>

<mosaic_0001>
module attributes {stable_mosaic.version = 11 : i64} {
  func.func @_ntk_heads_kernel(%arg0: i32, %arg1: memref<2x512x64xf32, #tpu.memory_space<vmem>>, %arg2: memref<2x512x64xf32, #tpu.memory_space<vmem>>, %arg3: memref<512x128xf32, #tpu.memory_space<vmem>>, %arg4: memref<1x128xf32, #tpu.memory_space<vmem>>, %arg5: memref<2x128xf32, #tpu.memory_space<vmem>>, %arg6: memref<2x128xf32, #tpu.memory_space<vmem>>) attributes {dimension_semantics = [#tpu.dimension_semantics<parallel>], iteration_bounds = array<i64: 1>, scalar_prefetch = 0 : i64, scratch_operands = 0 : i64, tpu.core_type = #tpu.core_type<tc>, window_params = [{transform_indices = @transform_0, window_bounds = array<i64: 2, 512, 64>}, {transform_indices = @transform_1, window_bounds = array<i64: 2, 512, 64>}, {pipeline_mode = #tpu.pipeline_mode<synchronous>, transform_indices = @transform_2, window_bounds = array<i64: 512, 128>}, {pipeline_mode = #tpu.pipeline_mode<synchronous>, transform_indices = @transform_3, window_bounds = array<i64: 1, 128>}, {transform_indices = @transform_4, window_bounds = array<i64: 2, 128>}, {transform_indices = @transform_5, window_bounds = array<i64: 2, 128>}]} {
    %c0 = arith.constant 0 : index
    %c0_0 = arith.constant 0 : index
    %c0_1 = arith.constant 0 : index
    %0 = vector.load %arg1[%c0, %c0_0, %c0_1] : memref<2x512x64xf32, #tpu.memory_space<vmem>>, vector<2x512x64xf32>
    %cst = arith.constant dense<0.000000e+00> : vector<2x512xf32>
    %1 = vector.multi_reduction <add>, %0, %cst [2] : vector<2x512x64xf32> to vector<2x512xf32>
    %cst_2 = arith.constant 6.90533954E-4 : f32
    %2 = vector.broadcast %cst_2 : f32 to vector<2x512xf32>
    %3 = arith.mulf %1, %2 : vector<2x512xf32>
    %c0_3 = arith.constant 0 : index
    %c0_4 = arith.constant 0 : index
    %c0_5 = arith.constant 0 : index
    %4 = vector.load %arg2[%c0_3, %c0_4, %c0_5] : memref<2x512x64xf32, #tpu.memory_space<vmem>>, vector<2x512x64xf32>
    %cst_6 = arith.constant dense<0.000000e+00> : vector<2x512xf32>
    %5 = vector.multi_reduction <add>, %4, %cst_6 [2] : vector<2x512x64xf32> to vector<2x512xf32>
    %cst_7 = arith.constant 6.90533954E-4 : f32
    %6 = vector.broadcast %cst_7 : f32 to vector<2x512xf32>
    %7 = arith.mulf %5, %6 : vector<2x512xf32>
    %c0_8 = arith.constant 0 : index
    %c0_9 = arith.constant 0 : index
    %8 = vector.load %arg3[%c0_8, %c0_9] : memref<512x128xf32, #tpu.memory_space<vmem>>, vector<512x128xf32>
    %cst_10 = arith.constant dense<0.000000e+00> : vector<2x128xf32>
    %9 = tpu.matmul %3, %8, %cst_10 {dimension_numbers = #tpu.dot_dimension_numbers<[1], [0], [0], [1], [0, 0, 1, 1], [], []>} : vector<2x512xf32>, vector<512x128xf32>, vector<2x128xf32> -> vector<2x128xf32>
    %cst_11 = arith.constant dense<0.000000e+00> : vector<2x128xf32>
    %10 = tpu.matmul %7, %8, %cst_11 {dimension_numbers = #tpu.dot_dimension_numbers<[1], [0], [0], [1], [0, 0, 1, 1], [], []>} : vector<2x512xf32>, vector<512x128xf32>, vector<2x128xf32> -> vector<2x128xf32>
    %c0_12 = arith.constant 0 : index
    %c0_13 = arith.constant 0 : index
    %11 = vector.load %arg4[%c0_12, %c0_13] : memref<1x128xf32, #tpu.memory_space<vmem>>, vector<1x128xf32>
    %12 = vector.broadcast %11 : vector<1x128xf32> to vector<2x128xf32>
    %13 = arith.addf %9, %12 : vector<2x128xf32>
    %c0_14 = arith.constant 0 : index
    %c0_15 = arith.constant 0 : index
    %14 = vector.load %arg5[%c0_14, %c0_15] : memref<2x128xf32, #tpu.memory_space<vmem>>, vector<2x128xf32>
    tpu.vector_store %arg5[%c0_14, %c0_15], %13 {strides = array<i32>} : memref<2x128xf32, #tpu.memory_space<vmem>>, vector<2x128xf32>,
    %c0_16 = arith.constant 0 : index
    %c0_17 = arith.constant 0 : index
    %15 = vector.load %arg6[%c0_16, %c0_17] : memref<2x128xf32, #tpu.memory_space<vmem>>, vector<2x128xf32>
    tpu.vector_store %arg6[%c0_16, %c0_17], %10 {strides = array<i32>} : memref<2x128xf32, #tpu.memory_space<vmem>>, vector<2x128xf32>,
    return
  }
  func.func @transform_0(%arg0: i32) -> (i32, i32, i32) {
    %c0_i32 = arith.constant 0 : i32
    %c0_i32_0 = arith.constant 0 : i32
    %c0_i32_1 = arith.constant 0 : i32
    return %arg0, %c0_i32, %c0_i32_0 : i32, i32, i32
  }
  func.func @transform_1(%arg0: i32) -> (i32, i32, i32) {
    %c0_i32 = arith.constant 0 : i32
    %c0_i32_0 = arith.constant 0 : i32
    %c0_i32_1 = arith.constant 0 : i32
    return %arg0, %c0_i32, %c0_i32_0 : i32, i32, i32
  }
  func.func @transform_2(%arg0: i32) -> (i32, i32) {
    %c0_i32 = arith.constant 0 : i32
    %c0_i32_0 = arith.constant 0 : i32
    %c0_i32_1 = arith.constant 0 : i32
    return %c0_i32, %c0_i32_0 : i32, i32
  }
  func.func @transform_3(%arg0: i32) -> (i32, i32) {
    %c0_i32 = arith.constant 0 : i32
    %c0_i32_0 = arith.constant 0 : i32
    %c0_i32_1 = arith.constant 0 : i32
    return %c0_i32, %c0_i32_0 : i32, i32
  }
  func.func @transform_4(%arg0: i32) -> (i32, i32) {
    %c0_i32 = arith.constant 0 : i32
    %c0_i32_0 = arith.constant 0 : i32
    return %arg0, %c0_i32 : i32, i32
  }
  func.func @transform_5(%arg0: i32) -> (i32, i32) {
    %c0_i32 = arith.constant 0 : i32
    %c0_i32_0 = arith.constant 0 : i32
    return %arg0, %c0_i32 : i32, i32
  }
}

</mosaic_0001>

<llo_original>
// kernel: tpu_custom_call.1
$region0: #{tpu_custom_call.1}
  #allocation0 [shape = 'u32[]', space=smem, size = 0x4, offset = 0x4, fixed_abs, tag = 'smem constant byte address 0x4 - core index']
  #allocation1 [shape = 'u32[72,128]{1,0:T(1,128)}', space=vmem, size = 0x9000, scoped, tag = 'internal scratch']
  %s0 = inlined_call_operand.vmem [shape: f32[2,512,64], index: 0, kind: input, shape index: {}]
  %s1 = inlined_call_operand.vmem [shape: f32[2,512,64], index: 1, kind: input, shape index: {}]
  %s2 = inlined_call_operand.vmem [shape: f32[512,128], index: 2, kind: input, shape index: {}]
  %s3 = inlined_call_operand.vmem [shape: f32[1,128], index: 3, kind: input, shape index: {}]
  %s4 = inlined_call_operand.hbm [shape: f32[2,128], index: 4, kind: output, shape index: {0}]
  %s5 = inlined_call_operand.hbm [shape: f32[2,128], index: 5, kind: output, shape index: {1}]
  %6 = xla_tuple %s4, %s5
  %s7 = sld [smem:[#allocation0]]
  $region34: #{tpu_custom_call.1} parent=0
    _
  %s9 = ssub.s32 1, %s7
  %s10 = scalar_select 0, %s9, %s7
  $region1: #{tpu_custom_call.1} parent=0
    #allocation2 [shape = 'u8[1024]{0}', space=vmem, size = 0x400, scoped, tag = 'output window, operand 0, single buffered']
    #allocation3 [shape = 's32[1]{0}', space=sflag, size = 0x4, scoped, tag = 'scoped memory for tpu_custom_call.1']
    #allocation4 [shape = 'u8[1024]{0}', space=vmem, size = 0x400, scoped, tag = 'output window, operand 1, single buffered']
    #allocation5 [shape = 's32[1]{0}', space=sflag, size = 0x4, scoped, tag = 'scoped memory for tpu_custom_call.1']
    %11 = vsyncpa [#allocation3], 0
    %12 = vsyncpa [#allocation5], 0
    // Predicated region
    $region2: #{tpu_custom_call.1} parent=1 // pred_check
      _
    $region3: #{tpu_custom_call.1} parent=1 // pred_check_branch
      %14 = sbr.rel (0) target = $region5
    $region4: #{tpu_custom_call.1} parent=1 // pred_region
      _
    $region5: #{tpu_custom_call.1} parent=1 // pred_fallthru
      _
    // Predicated region
    $region6: #{tpu_custom_call.1} parent=1 // pred_check
      _
    $region7: #{tpu_custom_call.1} parent=1 // pred_check_branch
      %16 = sbr.rel (0) target = $region9
    $region8: #{tpu_custom_call.1} parent=1 // pred_region
      _
    $region9: #{tpu_custom_call.1} parent=1 // pred_fallthru
      _
    // Predicated region
    $region10: #{tpu_custom_call.1} parent=1 // pred_check
      _
    $region11: #{tpu_custom_call.1} parent=1 // pred_check_branch
      %18 = sbr.rel (0) target = $region13
    $region12: #{tpu_custom_call.1} parent=1 // pred_region
      _
    $region13: #{tpu_custom_call.1} parent=1 // pred_fallthru
      _
    // Predicated region
    $region14: #{tpu_custom_call.1} parent=1 // pred_check
      _
    $region15: #{tpu_custom_call.1} parent=1 // pred_check_branch
      %20 = sbr.rel (0) target = $region17
    $region16: #{tpu_custom_call.1} parent=1 // pred_region
      _
    $region17: #{tpu_custom_call.1} parent=1 // pred_fallthru
      _
    %v21 = vld [vmem:[%s0] sm:$0xff]
    %v22 = vld [vmem:[%s0 + $0x8] sm:$0xff]
    %v23 = vld [vmem:[%s0 + $0x10] sm:$0xff]
    %v24 = vld [vmem:[%s0 + $0x18] sm:$0xff]
    %v25 = vld [vmem:[%s0 + $0x20] sm:$0xff]
    %v26 = vld [vmem:[%s0 + $0x28] sm:$0xff]
    %v27 = vld [vmem:[%s0 + $0x30] sm:$0xff]
    %v28 = vld [vmem:[%s0 + $0x38] sm:$0xff]
    %v29 = vld [vmem:[%s0 + $0x40] sm:$0xff]
    %v30 = vld [vmem:[%s0 + $0x48] sm:$0xff]
    %v31 = vld [vmem:[%s0 + $0x50] sm:$0xff]
    %v32 = vld [vmem:[%s0 + $0x58] sm:$0xff]
    %v33 = vld [vmem:[%s0 + $0x60] sm:$0xff]
    %v34 = vld [vmem:[%s0 + $0x68] sm:$0xff]
    %v35 = vld [vmem:[%s0 + $0x70] sm:$0xff]
    %v36 = vld [vmem:[%s0 + $0x78] sm:$0xff]
    %v37 = vld [vmem:[%s0 + $0x80] sm:$0xff]
    %v38 = vld [vmem:[%s0 + $0x88] sm:$0xff]
    %v39 = vld [vmem:[%s0 + $0x90] sm:$0xff]
    %v40 = vld [vmem:[%s0 + $0x98] sm:$0xff]
    %v41 = vld [vmem:[%s0 + $0xa0] sm:$0xff]
    %v42 = vld [vmem:[%s0 + $0xa8] sm:$0xff]
    %v43 = vld [vmem:[%s0 + $0xb0] sm:$0xff]
    %v44 = vld [vmem:[%s0 + $0xb8] sm:$0xff]
    %v45 = vld [vmem:[%s0 + $0xc0] sm:$0xff]
    %v46 = vld [vmem:[%s0 + $0xc8] sm:$0xff]
    %v47 = vld [vmem:[%s0 + $0xd0] sm:$0xff]
    %v48 = vld [vmem:[%s0 + $0xd8] sm:$0xff]
    %v49 = vld [vmem:[%s0 + $0xe0] sm:$0xff]
    %v50 = vld [vmem:[%s0 + $0xe8] sm:$0xff]
    %v51 = vld [vmem:[%s0 + $0xf0] sm:$0xff]
    %v52 = vld [vmem:[%s0 + $0xf8] sm:$0xff]
    %v53 = vld [vmem:[%s0 + $0x100] sm:$0xff]
    %v54 = vld [vmem:[%s0 + $0x108] sm:$0xff]
    %v55 = vld [vmem:[%s0 + $0x110] sm:$0xff]
    %v56 = vld [vmem:[%s0 + $0x118] sm:$0xff]
    %v57 = vld [vmem:[%s0 + $0x120] sm:$0xff]
    %v58 = vld [vmem:[%s0 + $0x128] sm:$0xff]
    %v59 = vld [vmem:[%s0 + $0x130] sm:$0xff]
    %v60 = vld [vmem:[%s0 + $0x138] sm:$0xff]
    %v61 = vld [vmem:[%s0 + $0x140] sm:$0xff]
    %v62 = vld [vmem:[%s0 + $0x148] sm:$0xff]
    %v63 = vld [vmem:[%s0 + $0x150] sm:$0xff]
    %v64 = vld [vmem:[%s0 + $0x158] sm:$0xff]
    %v65 = vld [vmem:[%s0 + $0x160] sm:$0xff]
    %v66 = vld [vmem:[%s0 + $0x168] sm:$0xff]
    %v67 = vld [vmem:[%s0 + $0x170] sm:$0xff]
    %v68 = vld [vmem:[%s0 + $0x178] sm:$0xff]
    %v69 = vld [vmem:[%s0 + $0x180] sm:$0xff]
    %v70 = vld [vmem:[%s0 + $0x188] sm:$0xff]
    %v71 = vld [vmem:[%s0 + $0x190] sm:$0xff]
    %v72 = vld [vmem:[%s0 + $0x198] sm:$0xff]
    %v73 = vld [vmem:[%s0 + $0x1a0] sm:$0xff]
    %v74 = vld [vmem:[%s0 + $0x1a8] sm:$0xff]
    %v75 = vld [vmem:[%s0 + $0x1b0] sm:$0xff]
    %v76 = vld [vmem:[%s0 + $0x1b8] sm:$0xff]
    %v77 = vld [vmem:[%s0 + $0x1c0] sm:$0xff]
    %v78 = vld [vmem:[%s0 + $0x1c8] sm:$0xff]
    %v79 = vld [vmem:[%s0 + $0x1d0] sm:$0xff]
    %v80 = vld [vmem:[%s0 + $0x1d8] sm:$0xff]
    %v81 = vld [vmem:[%s0 + $0x1e0] sm:$0xff]
    %v82 = vld [vmem:[%s0 + $0x1e8] sm:$0xff]
    %v83 = vld [vmem:[%s0 + $0x1f0] sm:$0xff]
    %v84 = vld [vmem:[%s0 + $0x1f8] sm:$0xff]
    %v85 = vld [vmem:[%s0 + $0x200] sm:$0xff]
    %v86 = vld [vmem:[%s0 + $0x208] sm:$0xff]
    %v87 = vld [vmem:[%s0 + $0x210] sm:$0xff]
    %v88 = vld [vmem:[%s0 + $0x218] sm:$0xff]
    %v89 = vld [vmem:[%s0 + $0x220] sm:$0xff]
    %v90 = vld [vmem:[%s0 + $0x228] sm:$0xff]
    %v91 = vld [vmem:[%s0 + $0x230] sm:$0xff]
    %v92 = vld [vmem:[%s0 + $0x238] sm:$0xff]
    %v93 = vld [vmem:[%s0 + $0x240] sm:$0xff]
    %v94 = vld [vmem:[%s0 + $0x248] sm:$0xff]
    %v95 = vld [vmem:[%s0 + $0x250] sm:$0xff]
    %v96 = vld [vmem:[%s0 + $0x258] sm:$0xff]
    %v97 = vld [vmem:[%s0 + $0x260] sm:$0xff]
    %v98 = vld [vmem:[%s0 + $0x268] sm:$0xff]
    %v99 = vld [vmem:[%s0 + $0x270] sm:$0xff]
    %v100 = vld [vmem:[%s0 + $0x278] sm:$0xff]
    %v101 = vld [vmem:[%s0 + $0x280] sm:$0xff]
    %v102 = vld [vmem:[%s0 + $0x288] sm:$0xff]
    %v103 = vld [vmem:[%s0 + $0x290] sm:$0xff]
    %v104 = vld [vmem:[%s0 + $0x298] sm:$0xff]
    %v105 = vld [vmem:[%s0 + $0x2a0] sm:$0xff]
    %v106 = vld [vmem:[%s0 + $0x2a8] sm:$0xff]
    %v107 = vld [vmem:[%s0 + $0x2b0] sm:$0xff]
    %v108 = vld [vmem:[%s0 + $0x2b8] sm:$0xff]
    %v109 = vld [vmem:[%s0 + $0x2c0] sm:$0xff]
    %v110 = vld [vmem:[%s0 + $0x2c8] sm:$0xff]
    %v111 = vld [vmem:[%s0 + $0x2d0] sm:$0xff]
    %v112 = vld [vmem:[%s0 + $0x2d8] sm:$0xff]
    %v113 = vld [vmem:[%s0 + $0x2e0] sm:$0xff]
    %v114 = vld [vmem:[%s0 + $0x2e8] sm:$0xff]
    %v115 = vld [vmem:[%s0 + $0x2f0] sm:$0xff]
    %v116 = vld [vmem:[%s0 + $0x2f8] sm:$0xff]
    %v117 = vld [vmem:[%s0 + $0x300] sm:$0xff]
    %v118 = vld [vmem:[%s0 + $0x308] sm:$0xff]
    %v119 = vld [vmem:[%s0 + $0x310] sm:$0xff]
    %v120 = vld [vmem:[%s0 + $0x318] sm:$0xff]
    %v121 = vld [vmem:[%s0 + $0x320] sm:$0xff]
    %v122 = vld [vmem:[%s0 + $0x328] sm:$0xff]
    %v123 = vld [vmem:[%s0 + $0x330] sm:$0xff]
    %v124 = vld [vmem:[%s0 + $0x338] sm:$0xff]
    %v125 = vld [vmem:[%s0 + $0x340] sm:$0xff]
    %v126 = vld [vmem:[%s0 + $0x348] sm:$0xff]
    %v127 = vld [vmem:[%s0 + $0x350] sm:$0xff]
    %v128 = vld [vmem:[%s0 + $0x358] sm:$0xff]
    %v129 = vld [vmem:[%s0 + $0x360] sm:$0xff]
    %v130 = vld [vmem:[%s0 + $0x368] sm:$0xff]
    %v131 = vld [vmem:[%s0 + $0x370] sm:$0xff]
    %v132 = vld [vmem:[%s0 + $0x378] sm:$0xff]
    %v133 = vld [vmem:[%s0 + $0x380] sm:$0xff]
    %v134 = vld [vmem:[%s0 + $0x388] sm:$0xff]
    %v135 = vld [vmem:[%s0 + $0x390] sm:$0xff]
    %v136 = vld [vmem:[%s0 + $0x398] sm:$0xff]
    %v137 = vld [vmem:[%s0 + $0x3a0] sm:$0xff]
    %v138 = vld [vmem:[%s0 + $0x3a8] sm:$0xff]
    %v139 = vld [vmem:[%s0 + $0x3b0] sm:$0xff]
    %v140 = vld [vmem:[%s0 + $0x3b8] sm:$0xff]
    %v141 = vld [vmem:[%s0 + $0x3c0] sm:$0xff]
    %v142 = vld [vmem:[%s0 + $0x3c8] sm:$0xff]
    %v143 = vld [vmem:[%s0 + $0x3d0] sm:$0xff]
    %v144 = vld [vmem:[%s0 + $0x3d8] sm:$0xff]
    %v145 = vld [vmem:[%s0 + $0x3e0] sm:$0xff]
    %v146 = vld [vmem:[%s0 + $0x3e8] sm:$0xff]
    %v147 = vld [vmem:[%s0 + $0x3f0] sm:$0xff]
    %v148 = vld [vmem:[%s0 + $0x3f8] sm:$0xff]
    %vm149 = vcmask 523264
    %v150 = vsel %vm149, %v21, 0.0
    %151 = vadd.xlane.f32.xlu0 %v150
    %v152 = vpop.xlane.xlu0 %151
    %v153 = vsel %vm149, %v22, 0.0
    %154 = vadd.xlane.f32.xlu0 %v153
    %v155 = vpop.xlane.xlu0 %154
    %v156 = vsel %vm149, %v23, 0.0
    %157 = vadd.xlane.f32.xlu0 %v156
    %v158 = vpop.xlane.xlu0 %157
    %v159 = vsel %vm149, %v24, 0.0
    %160 = vadd.xlane.f32.xlu0 %v159
    %v161 = vpop.xlane.xlu0 %160
    %v162 = vsel %vm149, %v25, 0.0
    %163 = vadd.xlane.f32.xlu0 %v162
    %v164 = vpop.xlane.xlu0 %163
    %v165 = vsel %vm149, %v26, 0.0
    %166 = vadd.xlane.f32.xlu0 %v165
    %v167 = vpop.xlane.xlu0 %166
    %v168 = vsel %vm149, %v27, 0.0
    %169 = vadd.xlane.f32.xlu0 %v168
    %v170 = vpop.xlane.xlu0 %169
    %v171 = vsel %vm149, %v28, 0.0
    %172 = vadd.xlane.f32.xlu0 %v171
    %v173 = vpop.xlane.xlu0 %172
    %v174 = vsel %vm149, %v29, 0.0
    %175 = vadd.xlane.f32.xlu0 %v174
    %v176 = vpop.xlane.xlu0 %175
    %v177 = vsel %vm149, %v30, 0.0
    %178 = vadd.xlane.f32.xlu0 %v177
    %v179 = vpop.xlane.xlu0 %178
    %v180 = vsel %vm149, %v31, 0.0
    %181 = vadd.xlane.f32.xlu0 %v180
    %v182 = vpop.xlane.xlu0 %181
    %v183 = vsel %vm149, %v32, 0.0
    %184 = vadd.xlane.f32.xlu0 %v183
    %v185 = vpop.xlane.xlu0 %184
    %v186 = vsel %vm149, %v33, 0.0
    %187 = vadd.xlane.f32.xlu0 %v186
    %v188 = vpop.xlane.xlu0 %187
    %v189 = vsel %vm149, %v34, 0.0
    %190 = vadd.xlane.f32.xlu0 %v189
    %v191 = vpop.xlane.xlu0 %190
    %v192 = vsel %vm149, %v35, 0.0
    %193 = vadd.xlane.f32.xlu0 %v192
    %v194 = vpop.xlane.xlu0 %193
    %v195 = vsel %vm149, %v36, 0.0
    %196 = vadd.xlane.f32.xlu0 %v195
    %v197 = vpop.xlane.xlu0 %196
    %v198 = vsel %vm149, %v37, 0.0
    %199 = vadd.xlane.f32.xlu0 %v198
    %v200 = vpop.xlane.xlu0 %199
    %v201 = vsel %vm149, %v38, 0.0
    %202 = vadd.xlane.f32.xlu0 %v201
    %v203 = vpop.xlane.xlu0 %202
    %v204 = vsel %vm149, %v39, 0.0
    %205 = vadd.xlane.f32.xlu0 %v204
    %v206 = vpop.xlane.xlu0 %205
    %v207 = vsel %vm149, %v40, 0.0
    %208 = vadd.xlane.f32.xlu0 %v207
    %v209 = vpop.xlane.xlu0 %208
    %v210 = vsel %vm149, %v41, 0.0
    %211 = vadd.xlane.f32.xlu0 %v210
    %v212 = vpop.xlane.xlu0 %211
    %v213 = vsel %vm149, %v42, 0.0
    %214 = vadd.xlane.f32.xlu0 %v213
    %v215 = vpop.xlane.xlu0 %214
    %v216 = vsel %vm149, %v43, 0.0
    %217 = vadd.xlane.f32.xlu0 %v216
    %v218 = vpop.xlane.xlu0 %217
    %v219 = vsel %vm149, %v44, 0.0
    %220 = vadd.xlane.f32.xlu0 %v219
    %v221 = vpop.xlane.xlu0 %220
    %v222 = vsel %vm149, %v45, 0.0
    %223 = vadd.xlane.f32.xlu0 %v222
    %v224 = vpop.xlane.xlu0 %223
    %v225 = vsel %vm149, %v46, 0.0
    %226 = vadd.xlane.f32.xlu0 %v225
    %v227 = vpop.xlane.xlu0 %226
    %v228 = vsel %vm149, %v47, 0.0
    %229 = vadd.xlane.f32.xlu0 %v228
    %v230 = vpop.xlane.xlu0 %229
    %v231 = vsel %vm149, %v48, 0.0
    %232 = vadd.xlane.f32.xlu0 %v231
    %v233 = vpop.xlane.xlu0 %232
    %v234 = vsel %vm149, %v49, 0.0
    %235 = vadd.xlane.f32.xlu0 %v234
    %v236 = vpop.xlane.xlu0 %235
    %v237 = vsel %vm149, %v50, 0.0
    %238 = vadd.xlane.f32.xlu0 %v237
    %v239 = vpop.xlane.xlu0 %238
    %v240 = vsel %vm149, %v51, 0.0
    %241 = vadd.xlane.f32.xlu0 %v240
    %v242 = vpop.xlane.xlu0 %241
    %v243 = vsel %vm149, %v52, 0.0
    %244 = vadd.xlane.f32.xlu0 %v243
    %v245 = vpop.xlane.xlu0 %244
    %v246 = vsel %vm149, %v53, 0.0
    %247 = vadd.xlane.f32.xlu0 %v246
    %v248 = vpop.xlane.xlu0 %247
    %v249 = vsel %vm149, %v54, 0.0
    %250 = vadd.xlane.f32.xlu0 %v249
    %v251 = vpop.xlane.xlu0 %250
    %v252 = vsel %vm149, %v55, 0.0
    %253 = vadd.xlane.f32.xlu0 %v252
    %v254 = vpop.xlane.xlu0 %253
    %v255 = vsel %vm149, %v56, 0.0
    %256 = vadd.xlane.f32.xlu0 %v255
    %v257 = vpop.xlane.xlu0 %256
    %v258 = vsel %vm149, %v57, 0.0
    %259 = vadd.xlane.f32.xlu0 %v258
    %v260 = vpop.xlane.xlu0 %259
    %v261 = vsel %vm149, %v58, 0.0
    %262 = vadd.xlane.f32.xlu0 %v261
    %v263 = vpop.xlane.xlu0 %262
    %v264 = vsel %vm149, %v59, 0.0
    %265 = vadd.xlane.f32.xlu0 %v264
    %v266 = vpop.xlane.xlu0 %265
    %v267 = vsel %vm149, %v60, 0.0
    %268 = vadd.xlane.f32.xlu0 %v267
    %v269 = vpop.xlane.xlu0 %268
    %v270 = vsel %vm149, %v61, 0.0
    %271 = vadd.xlane.f32.xlu0 %v270
    %v272 = vpop.xlane.xlu0 %271
    %v273 = vsel %vm149, %v62, 0.0
    %274 = vadd.xlane.f32.xlu0 %v273
    %v275 = vpop.xlane.xlu0 %274
    %v276 = vsel %vm149, %v63, 0.0
    %277 = vadd.xlane.f32.xlu0 %v276
    %v278 = vpop.xlane.xlu0 %277
    %v279 = vsel %vm149, %v64, 0.0
    %280 = vadd.xlane.f32.xlu0 %v279
    %v281 = vpop.xlane.xlu0 %280
    %v282 = vsel %vm149, %v65, 0.0
    %283 = vadd.xlane.f32.xlu0 %v282
    %v284 = vpop.xlane.xlu0 %283
    %v285 = vsel %vm149, %v66, 0.0
    %286 = vadd.xlane.f32.xlu0 %v285
    %v287 = vpop.xlane.xlu0 %286
    %v288 = vsel %vm149, %v67, 0.0
    %289 = vadd.xlane.f32.xlu0 %v288
    %v290 = vpop.xlane.xlu0 %289
    %v291 = vsel %vm149, %v68, 0.0
    %292 = vadd.xlane.f32.xlu0 %v291
    %v293 = vpop.xlane.xlu0 %292
    %v294 = vsel %vm149, %v69, 0.0
    %295 = vadd.xlane.f32.xlu0 %v294
    %v296 = vpop.xlane.xlu0 %295
    %v297 = vsel %vm149, %v70, 0.0
    %298 = vadd.xlane.f32.xlu0 %v297
    %v299 = vpop.xlane.xlu0 %298
    %v300 = vsel %vm149, %v71, 0.0
    %301 = vadd.xlane.f32.xlu0 %v300
    %v302 = vpop.xlane.xlu0 %301
    %v303 = vsel %vm149, %v72, 0.0
    %304 = vadd.xlane.f32.xlu0 %v303
    %v305 = vpop.xlane.xlu0 %304
    %v306 = vsel %vm149, %v73, 0.0
    %307 = vadd.xlane.f32.xlu0 %v306
    %v308 = vpop.xlane.xlu0 %307
    %v309 = vsel %vm149, %v74, 0.0
    %310 = vadd.xlane.f32.xlu0 %v309
    %v311 = vpop.xlane.xlu0 %310
    %v312 = vsel %vm149, %v75, 0.0
    %313 = vadd.xlane.f32.xlu0 %v312
    %v314 = vpop.xlane.xlu0 %313
    %v315 = vsel %vm149, %v76, 0.0
    %316 = vadd.xlane.f32.xlu0 %v315
    %v317 = vpop.xlane.xlu0 %316
    %v318 = vsel %vm149, %v77, 0.0
    %319 = vadd.xlane.f32.xlu0 %v318
    %v320 = vpop.xlane.xlu0 %319
    %v321 = vsel %vm149, %v78, 0.0
    %322 = vadd.xlane.f32.xlu0 %v321
    %v323 = vpop.xlane.xlu0 %322
    %v324 = vsel %vm149, %v79, 0.0
    %325 = vadd.xlane.f32.xlu0 %v324
    %v326 = vpop.xlane.xlu0 %325
    %v327 = vsel %vm149, %v80, 0.0
    %328 = vadd.xlane.f32.xlu0 %v327
    %v329 = vpop.xlane.xlu0 %328
    %v330 = vsel %vm149, %v81, 0.0
    %331 = vadd.xlane.f32.xlu0 %v330
    %v332 = vpop.xlane.xlu0 %331
    %v333 = vsel %vm149, %v82, 0.0
    %334 = vadd.xlane.f32.xlu0 %v333
    %v335 = vpop.xlane.xlu0 %334
    %v336 = vsel %vm149, %v83, 0.0
    %337 = vadd.xlane.f32.xlu0 %v336
    %v338 = vpop.xlane.xlu0 %337
    %v339 = vsel %vm149, %v84, 0.0
    %340 = vadd.xlane.f32.xlu0 %v339
    %v341 = vpop.xlane.xlu0 %340
    %v342 = vsel %vm149, %v85, 0.0
    %343 = vadd.xlane.f32.xlu0 %v342
    %v344 = vpop.xlane.xlu0 %343
    %v345 = vsel %vm149, %v86, 0.0
    %346 = vadd.xlane.f32.xlu0 %v345
    %v347 = vpop.xlane.xlu0 %346
    %v348 = vsel %vm149, %v87, 0.0
    %349 = vadd.xlane.f32.xlu0 %v348
    %v350 = vpop.xlane.xlu0 %349
    %v351 = vsel %vm149, %v88, 0.0
    %352 = vadd.xlane.f32.xlu0 %v351
    %v353 = vpop.xlane.xlu0 %352
    %v354 = vsel %vm149, %v89, 0.0
    %355 = vadd.xlane.f32.xlu0 %v354
    %v356 = vpop.xlane.xlu0 %355
    %v357 = vsel %vm149, %v90, 0.0
    %358 = vadd.xlane.f32.xlu0 %v357
    %v359 = vpop.xlane.xlu0 %358
    %v360 = vsel %vm149, %v91, 0.0
    %361 = vadd.xlane.f32.xlu0 %v360
    %v362 = vpop.xlane.xlu0 %361
    %v363 = vsel %vm149, %v92, 0.0
    %364 = vadd.xlane.f32.xlu0 %v363
    %v365 = vpop.xlane.xlu0 %364
    %v366 = vsel %vm149, %v93, 0.0
    %367 = vadd.xlane.f32.xlu0 %v366
    %v368 = vpop.xlane.xlu0 %367
    %v369 = vsel %vm149, %v94, 0.0
    %370 = vadd.xlane.f32.xlu0 %v369
    %v371 = vpop.xlane.xlu0 %370
    %v372 = vsel %vm149, %v95, 0.0
    %373 = vadd.xlane.f32.xlu0 %v372
    %v374 = vpop.xlane.xlu0 %373
    %v375 = vsel %vm149, %v96, 0.0
    %376 = vadd.xlane.f32.xlu0 %v375
    %v377 = vpop.xlane.xlu0 %376
    %v378 = vsel %vm149, %v97, 0.0
    %379 = vadd.xlane.f32.xlu0 %v378
    %v380 = vpop.xlane.xlu0 %379
    %v381 = vsel %vm149, %v98, 0.0
    %382 = vadd.xlane.f32.xlu0 %v381
    %v383 = vpop.xlane.xlu0 %382
    %v384 = vsel %vm149, %v99, 0.0
    %385 = vadd.xlane.f32.xlu0 %v384
    %v386 = vpop.xlane.xlu0 %385
    %v387 = vsel %vm149, %v100, 0.0
    %388 = vadd.xlane.f32.xlu0 %v387
    %v389 = vpop.xlane.xlu0 %388
    %v390 = vsel %vm149, %v101, 0.0
    %391 = vadd.xlane.f32.xlu0 %v390
    %v392 = vpop.xlane.xlu0 %391
    %v393 = vsel %vm149, %v102, 0.0
    %394 = vadd.xlane.f32.xlu0 %v393
    %v395 = vpop.xlane.xlu0 %394
    %v396 = vsel %vm149, %v103, 0.0
    %397 = vadd.xlane.f32.xlu0 %v396
    %v398 = vpop.xlane.xlu0 %397
    %v399 = vsel %vm149, %v104, 0.0
    %400 = vadd.xlane.f32.xlu0 %v399
    %v401 = vpop.xlane.xlu0 %400
    %v402 = vsel %vm149, %v105, 0.0
    %403 = vadd.xlane.f32.xlu0 %v402
    %v404 = vpop.xlane.xlu0 %403
    %v405 = vsel %vm149, %v106, 0.0
    %406 = vadd.xlane.f32.xlu0 %v405
    %v407 = vpop.xlane.xlu0 %406
    %v408 = vsel %vm149, %v107, 0.0
    %409 = vadd.xlane.f32.xlu0 %v408
    %v410 = vpop.xlane.xlu0 %409
    %v411 = vsel %vm149, %v108, 0.0
    %412 = vadd.xlane.f32.xlu0 %v411
    %v413 = vpop.xlane.xlu0 %412
    %v414 = vsel %vm149, %v109, 0.0
    %415 = vadd.xlane.f32.xlu0 %v414
    %v416 = vpop.xlane.xlu0 %415
    %v417 = vsel %vm149, %v110, 0.0
    %418 = vadd.xlane.f32.xlu0 %v417
    %v419 = vpop.xlane.xlu0 %418
    %v420 = vsel %vm149, %v111, 0.0
    %421 = vadd.xlane.f32.xlu0 %v420
    %v422 = vpop.xlane.xlu0 %421
    %v423 = vsel %vm149, %v112, 0.0
    %424 = vadd.xlane.f32.xlu0 %v423
    %v425 = vpop.xlane.xlu0 %424
    %v426 = vsel %vm149, %v113, 0.0
    %427 = vadd.xlane.f32.xlu0 %v426
    %v428 = vpop.xlane.xlu0 %427
    %v429 = vsel %vm149, %v114, 0.0
    %430 = vadd.xlane.f32.xlu0 %v429
    %v431 = vpop.xlane.xlu0 %430
    %v432 = vsel %vm149, %v115, 0.0
    %433 = vadd.xlane.f32.xlu0 %v432
    %v434 = vpop.xlane.xlu0 %433
    %v435 = vsel %vm149, %v116, 0.0
    %436 = vadd.xlane.f32.xlu0 %v435
    %v437 = vpop.xlane.xlu0 %436
    %v438 = vsel %vm149, %v117, 0.0
    %439 = vadd.xlane.f32.xlu0 %v438
    %v440 = vpop.xlane.xlu0 %439
    %v441 = vsel %vm149, %v118, 0.0
    %442 = vadd.xlane.f32.xlu0 %v441
    %v443 = vpop.xlane.xlu0 %442
    %v444 = vsel %vm149, %v119, 0.0
    %445 = vadd.xlane.f32.xlu0 %v444
    %v446 = vpop.xlane.xlu0 %445
    %v447 = vsel %vm149, %v120, 0.0
    %448 = vadd.xlane.f32.xlu0 %v447
    %v449 = vpop.xlane.xlu0 %448
    %v450 = vsel %vm149, %v121, 0.0
    %451 = vadd.xlane.f32.xlu0 %v450
    %v452 = vpop.xlane.xlu0 %451
    %v453 = vsel %vm149, %v122, 0.0
    %454 = vadd.xlane.f32.xlu0 %v453
    %v455 = vpop.xlane.xlu0 %454
    %v456 = vsel %vm149, %v123, 0.0
    %457 = vadd.xlane.f32.xlu0 %v456
    %v458 = vpop.xlane.xlu0 %457
    %v459 = vsel %vm149, %v124, 0.0
    %460 = vadd.xlane.f32.xlu0 %v459
    %v461 = vpop.xlane.xlu0 %460
    %v462 = vsel %vm149, %v125, 0.0
    %463 = vadd.xlane.f32.xlu0 %v462
    %v464 = vpop.xlane.xlu0 %463
    %v465 = vsel %vm149, %v126, 0.0
    %466 = vadd.xlane.f32.xlu0 %v465
    %v467 = vpop.xlane.xlu0 %466
    %v468 = vsel %vm149, %v127, 0.0
    %469 = vadd.xlane.f32.xlu0 %v468
    %v470 = vpop.xlane.xlu0 %469
    %v471 = vsel %vm149, %v128, 0.0
    %472 = vadd.xlane.f32.xlu0 %v471
    %v473 = vpop.xlane.xlu0 %472
    %v474 = vsel %vm149, %v129, 0.0
    %475 = vadd.xlane.f32.xlu0 %v474
    %v476 = vpop.xlane.xlu0 %475
    %v477 = vsel %vm149, %v130, 0.0
    %478 = vadd.xlane.f32.xlu0 %v477
    %v479 = vpop.xlane.xlu0 %478
    %v480 = vsel %vm149, %v131, 0.0
    %481 = vadd.xlane.f32.xlu0 %v480
    %v482 = vpop.xlane.xlu0 %481
    %v483 = vsel %vm149, %v132, 0.0
    %484 = vadd.xlane.f32.xlu0 %v483
    %v485 = vpop.xlane.xlu0 %484
    %v486 = vsel %vm149, %v133, 0.0
    %487 = vadd.xlane.f32.xlu0 %v486
    %v488 = vpop.xlane.xlu0 %487
    %v489 = vsel %vm149, %v134, 0.0
    %490 = vadd.xlane.f32.xlu0 %v489
    %v491 = vpop.xlane.xlu0 %490
    %v492 = vsel %vm149, %v135, 0.0
    %493 = vadd.xlane.f32.xlu0 %v492
    %v494 = vpop.xlane.xlu0 %493
    %v495 = vsel %vm149, %v136, 0.0
    %496 = vadd.xlane.f32.xlu0 %v495
    %v497 = vpop.xlane.xlu0 %496
    %v498 = vsel %vm149, %v137, 0.0
    %499 = vadd.xlane.f32.xlu0 %v498
    %v500 = vpop.xlane.xlu0 %499
    %v501 = vsel %vm149, %v138, 0.0
    %502 = vadd.xlane.f32.xlu0 %v501
    %v503 = vpop.xlane.xlu0 %502
    %v504 = vsel %vm149, %v139, 0.0
    %505 = vadd.xlane.f32.xlu0 %v504
    %v506 = vpop.xlane.xlu0 %505
    %v507 = vsel %vm149, %v140, 0.0
    %508 = vadd.xlane.f32.xlu0 %v507
    %v509 = vpop.xlane.xlu0 %508
    %v510 = vsel %vm149, %v141, 0.0
    %511 = vadd.xlane.f32.xlu0 %v510
    %v512 = vpop.xlane.xlu0 %511
    %v513 = vsel %vm149, %v142, 0.0
    %514 = vadd.xlane.f32.xlu0 %v513
    %v515 = vpop.xlane.xlu0 %514
    %v516 = vsel %vm149, %v143, 0.0
    %517 = vadd.xlane.f32.xlu0 %v516
    %v518 = vpop.xlane.xlu0 %517
    %v519 = vsel %vm149, %v144, 0.0
    %520 = vadd.xlane.f32.xlu0 %v519
    %v521 = vpop.xlane.xlu0 %520
    %v522 = vsel %vm149, %v145, 0.0
    %523 = vadd.xlane.f32.xlu0 %v522
    %v524 = vpop.xlane.xlu0 %523
    %v525 = vsel %vm149, %v146, 0.0
    %526 = vadd.xlane.f32.xlu0 %v525
    %v527 = vpop.xlane.xlu0 %526
    %v528 = vsel %vm149, %v147, 0.0
    %529 = vadd.xlane.f32.xlu0 %v528
    %v530 = vpop.xlane.xlu0 %529
    %v531 = vsel %vm149, %v148, 0.0
    %532 = vadd.xlane.f32.xlu0 %v531
    %v533 = vpop.xlane.xlu0 %532
    %v534 = vmul.f32 %v152, 0.00069053395
    %v535 = vmul.f32 %v155, 0.00069053395
    %v536 = vmul.f32 %v158, 0.00069053395
    %v537 = vmul.f32 %v161, 0.00069053395
    %v538 = vmul.f32 %v164, 0.00069053395
    %v539 = vmul.f32 %v167, 0.00069053395
    %v540 = vmul.f32 %v170, 0.00069053395
    %v541 = vmul.f32 %v173, 0.00069053395
    %v542 = vmul.f32 %v176, 0.00069053395
    %v543 = vmul.f32 %v179, 0.00069053395
    %v544 = vmul.f32 %v182, 0.00069053395
    %v545 = vmul.f32 %v185, 0.00069053395
    %v546 = vmul.f32 %v188, 0.00069053395
    %v547 = vmul.f32 %v191, 0.00069053395
    %v548 = vmul.f32 %v194, 0.00069053395
    %v549 = vmul.f32 %v197, 0.00069053395
    %v550 = vmul.f32 %v200, 0.00069053395
    %v551 = vmul.f32 %v203, 0.00069053395
    %v552 = vmul.f32 %v206, 0.00069053395
    %v553 = vmul.f32 %v209, 0.00069053395
    %v554 = vmul.f32 %v212, 0.00069053395
    %v555 = vmul.f32 %v215, 0.00069053395
    %v556 = vmul.f32 %v218, 0.00069053395
    %v557 = vmul.f32 %v221, 0.00069053395
    %v558 = vmul.f32 %v224, 0.00069053395
    %v559 = vmul.f32 %v227, 0.00069053395
    %v560 = vmul.f32 %v230, 0.00069053395
    %v561 = vmul.f32 %v233, 0.00069053395
    %v562 = vmul.f32 %v236, 0.00069053395
    %v563 = vmul.f32 %v239, 0.00069053395
    %v564 = vmul.f32 %v242, 0.00069053395
    %v565 = vmul.f32 %v245, 0.00069053395
    %v566 = vmul.f32 %v248, 0.00069053395
    %v567 = vmul.f32 %v251, 0.00069053395
    %v568 = vmul.f32 %v254, 0.00069053395
    %v569 = vmul.f32 %v257, 0.00069053395
    %v570 = vmul.f32 %v260, 0.00069053395
    %v571 = vmul.f32 %v263, 0.00069053395
    %v572 = vmul.f32 %v266, 0.00069053395
    %v573 = vmul.f32 %v269, 0.00069053395
    %v574 = vmul.f32 %v272, 0.00069053395
    %v575 = vmul.f32 %v275, 0.00069053395
    %v576 = vmul.f32 %v278, 0.00069053395
    %v577 = vmul.f32 %v281, 0.00069053395
    %v578 = vmul.f32 %v284, 0.00069053395
    %v579 = vmul.f32 %v287, 0.00069053395
    %v580 = vmul.f32 %v290, 0.00069053395
    %v581 = vmul.f32 %v293, 0.00069053395
    %v582 = vmul.f32 %v296, 0.00069053395
    %v583 = vmul.f32 %v299, 0.00069053395
    %v584 = vmul.f32 %v302, 0.00069053395
    %v585 = vmul.f32 %v305, 0.00069053395
    %v586 = vmul.f32 %v308, 0.00069053395
    %v587 = vmul.f32 %v311, 0.00069053395
    %v588 = vmul.f32 %v314, 0.00069053395
    %v589 = vmul.f32 %v317, 0.00069053395
    %v590 = vmul.f32 %v320, 0.00069053395
    %v591 = vmul.f32 %v323, 0.00069053395
    %v592 = vmul.f32 %v326, 0.00069053395
    %v593 = vmul.f32 %v329, 0.00069053395
    %v594 = vmul.f32 %v332, 0.00069053395
    %v595 = vmul.f32 %v335, 0.00069053395
    %v596 = vmul.f32 %v338, 0.00069053395
    %v597 = vmul.f32 %v341, 0.00069053395
    %v598 = vmul.f32 %v344, 0.00069053395
    %v599 = vmul.f32 %v347, 0.00069053395
    %v600 = vmul.f32 %v350, 0.00069053395
    %v601 = vmul.f32 %v353, 0.00069053395
    %v602 = vmul.f32 %v356, 0.00069053395
    %v603 = vmul.f32 %v359, 0.00069053395
    %v604 = vmul.f32 %v362, 0.00069053395
    %v605 = vmul.f32 %v365, 0.00069053395
    %v606 = vmul.f32 %v368, 0.00069053395
    %v607 = vmul.f32 %v371, 0.00069053395
    %v608 = vmul.f32 %v374, 0.00069053395
    %v609 = vmul.f32 %v377, 0.00069053395
    %v610 = vmul.f32 %v380, 0.00069053395
    %v611 = vmul.f32 %v383, 0.00069053395
    %v612 = vmul.f32 %v386, 0.00069053395
    %v613 = vmul.f32 %v389, 0.00069053395
    %v614 = vmul.f32 %v392, 0.00069053395
    %v615 = vmul.f32 %v395, 0.00069053395
    %v616 = vmul.f32 %v398, 0.00069053395
    %v617 = vmul.f32 %v401, 0.00069053395
    %v618 = vmul.f32 %v404, 0.00069053395
    %v619 = vmul.f32 %v407, 0.00069053395
    %v620 = vmul.f32 %v410, 0.00069053395
    %v621 = vmul.f32 %v413, 0.00069053395
    %v622 = vmul.f32 %v416, 0.00069053395
    %v623 = vmul.f32 %v419, 0.00069053395
    %v624 = vmul.f32 %v422, 0.00069053395
    %v625 = vmul.f32 %v425, 0.00069053395
    %v626 = vmul.f32 %v428, 0.00069053395
    %v627 = vmul.f32 %v431, 0.00069053395
    %v628 = vmul.f32 %v434, 0.00069053395
    %v629 = vmul.f32 %v437, 0.00069053395
    %v630 = vmul.f32 %v440, 0.00069053395
    %v631 = vmul.f32 %v443, 0.00069053395
    %v632 = vmul.f32 %v446, 0.00069053395
    %v633 = vmul.f32 %v449, 0.00069053395
    %v634 = vmul.f32 %v452, 0.00069053395
    %v635 = vmul.f32 %v455, 0.00069053395
    %v636 = vmul.f32 %v458, 0.00069053395
    %v637 = vmul.f32 %v461, 0.00069053395
    %v638 = vmul.f32 %v464, 0.00069053395
    %v639 = vmul.f32 %v467, 0.00069053395
    %v640 = vmul.f32 %v470, 0.00069053395
    %v641 = vmul.f32 %v473, 0.00069053395
    %v642 = vmul.f32 %v476, 0.00069053395
    %v643 = vmul.f32 %v479, 0.00069053395
    %v644 = vmul.f32 %v482, 0.00069053395
    %v645 = vmul.f32 %v485, 0.00069053395
    %v646 = vmul.f32 %v488, 0.00069053395
    %v647 = vmul.f32 %v491, 0.00069053395
    %v648 = vmul.f32 %v494, 0.00069053395
    %v649 = vmul.f32 %v497, 0.00069053395
    %v650 = vmul.f32 %v500, 0.00069053395
    %v651 = vmul.f32 %v503, 0.00069053395
    %v652 = vmul.f32 %v506, 0.00069053395
    %v653 = vmul.f32 %v509, 0.00069053395
    %v654 = vmul.f32 %v512, 0.00069053395
    %v655 = vmul.f32 %v515, 0.00069053395
    %v656 = vmul.f32 %v518, 0.00069053395
    %v657 = vmul.f32 %v521, 0.00069053395
    %v658 = vmul.f32 %v524, 0.00069053395
    %v659 = vmul.f32 %v527, 0.00069053395
    %v660 = vmul.f32 %v530, 0.00069053395
    %v661 = vmul.f32 %v533, 0.00069053395
    %v662 = vld [vmem:[%s1] sm:$0xff]
    %v663 = vld [vmem:[%s1 + $0x8] sm:$0xff]
    %v664 = vld [vmem:[%s1 + $0x10] sm:$0xff]
    %v665 = vld [vmem:[%s1 + $0x18] sm:$0xff]
    %v666 = vld [vmem:[%s1 + $0x20] sm:$0xff]
    %v667 = vld [vmem:[%s1 + $0x28] sm:$0xff]
    %v668 = vld [vmem:[%s1 + $0x30] sm:$0xff]
    %v669 = vld [vmem:[%s1 + $0x38] sm:$0xff]
    %v670 = vld [vmem:[%s1 + $0x40] sm:$0xff]
    %v671 = vld [vmem:[%s1 + $0x48] sm:$0xff]
    %v672 = vld [vmem:[%s1 + $0x50] sm:$0xff]
    %v673 = vld [vmem:[%s1 + $0x58] sm:$0xff]
    %v674 = vld [vmem:[%s1 + $0x60] sm:$0xff]
    %v675 = vld [vmem:[%s1 + $0x68] sm:$0xff]
    %v676 = vld [vmem:[%s1 + $0x70] sm:$0xff]
    %v677 = vld [vmem:[%s1 + $0x78] sm:$0xff]
    %v678 = vld [vmem:[%s1 + $0x80] sm:$0xff]
    %v679 = vld [vmem:[%s1 + $0x88] sm:$0xff]
    %v680 = vld [vmem:[%s1 + $0x90] sm:$0xff]
    %v681 = vld [vmem:[%s1 + $0x98] sm:$0xff]
    %v682 = vld [vmem:[%s1 + $0xa0] sm:$0xff]
    %v683 = vld [vmem:[%s1 + $0xa8] sm:$0xff]
    %v684 = vld [vmem:[%s1 + $0xb0] sm:$0xff]
    %v685 = vld [vmem:[%s1 + $0xb8] sm:$0xff]
    %v686 = vld [vmem:[%s1 + $0xc0] sm:$0xff]
    %v687 = vld [vmem:[%s1 + $0xc8] sm:$0xff]
    %v688 = vld [vmem:[%s1 + $0xd0] sm:$0xff]
    %v689 = vld [vmem:[%s1 + $0xd8] sm:$0xff]
    %v690 = vld [vmem:[%s1 + $0xe0] sm:$0xff]
    %v691 = vld [vmem:[%s1 + $0xe8] sm:$0xff]
    %v692 = vld [vmem:[%s1 + $0xf0] sm:$0xff]
    %v693 = vld [vmem:[%s1 + $0xf8] sm:$0xff]
    %v694 = vld [vmem:[%s1 + $0x100] sm:$0xff]
    %v695 = vld [vmem:[%s1 + $0x108] sm:$0xff]
    %v696 = vld [vmem:[%s1 + $0x110] sm:$0xff]
    %v697 = vld [vmem:[%s1 + $0x118] sm:$0xff]
    %v698 = vld [vmem:[%s1 + $0x120] sm:$0xff]
    %v699 = vld [vmem:[%s1 + $0x128] sm:$0xff]
    %v700 = vld [vmem:[%s1 + $0x130] sm:$0xff]
    %v701 = vld [vmem:[%s1 + $0x138] sm:$0xff]
    %v702 = vld [vmem:[%s1 + $0x140] sm:$0xff]
    %v703 = vld [vmem:[%s1 + $0x148] sm:$0xff]
    %v704 = vld [vmem:[%s1 + $0x150] sm:$0xff]
    %v705 = vld [vmem:[%s1 + $0x158] sm:$0xff]
    %v706 = vld [vmem:[%s1 + $0x160] sm:$0xff]
    %v707 = vld [vmem:[%s1 + $0x168] sm:$0xff]
    %v708 = vld [vmem:[%s1 + $0x170] sm:$0xff]
    %v709 = vld [vmem:[%s1 + $0x178] sm:$0xff]
    %v710 = vld [vmem:[%s1 + $0x180] sm:$0xff]
    %v711 = vld [vmem:[%s1 + $0x188] sm:$0xff]
    %v712 = vld [vmem:[%s1 + $0x190] sm:$0xff]
    %v713 = vld [vmem:[%s1 + $0x198] sm:$0xff]
    %v714 = vld [vmem:[%s1 + $0x1a0] sm:$0xff]
    %v715 = vld [vmem:[%s1 + $0x1a8] sm:$0xff]
    %v716 = vld [vmem:[%s1 + $0x1b0] sm:$0xff]
    %v717 = vld [vmem:[%s1 + $0x1b8] sm:$0xff]
    %v718 = vld [vmem:[%s1 + $0x1c0] sm:$0xff]
    %v719 = vld [vmem:[%s1 + $0x1c8] sm:$0xff]
    %v720 = vld [vmem:[%s1 + $0x1d0] sm:$0xff]
    %v721 = vld [vmem:[%s1 + $0x1d8] sm:$0xff]
    %v722 = vld [vmem:[%s1 + $0x1e0] sm:$0xff]
    %v723 = vld [vmem:[%s1 + $0x1e8] sm:$0xff]
    %v724 = vld [vmem:[%s1 + $0x1f0] sm:$0xff]
    %v725 = vld [vmem:[%s1 + $0x1f8] sm:$0xff]
    %v726 = vld [vmem:[%s1 + $0x200] sm:$0xff]
    %v727 = vld [vmem:[%s1 + $0x208] sm:$0xff]
    %v728 = vld [vmem:[%s1 + $0x210] sm:$0xff]
    %v729 = vld [vmem:[%s1 + $0x218] sm:$0xff]
    %v730 = vld [vmem:[%s1 + $0x220] sm:$0xff]
    %v731 = vld [vmem:[%s1 + $0x228] sm:$0xff]
    %v732 = vld [vmem:[%s1 + $0x230] sm:$0xff]
    %v733 = vld [vmem:[%s1 + $0x238] sm:$0xff]
    %v734 = vld [vmem:[%s1 + $0x240] sm:$0xff]
    %v735 = vld [vmem:[%s1 + $0x248] sm:$0xff]
    %v736 = vld [vmem:[%s1 + $0x250] sm:$0xff]
    %v737 = vld [vmem:[%s1 + $0x258] sm:$0xff]
    %v738 = vld [vmem:[%s1 + $0x260] sm:$0xff]
    %v739 = vld [vmem:[%s1 + $0x268] sm:$0xff]
    %v740 = vld [vmem:[%s1 + $0x270] sm:$0xff]
    %v741 = vld [vmem:[%s1 + $0x278] sm:$0xff]
    %v742 = vld [vmem:[%s1 + $0x280] sm:$0xff]
    %v743 = vld [vmem:[%s1 + $0x288] sm:$0xff]
    %v744 = vld [vmem:[%s1 + $0x290] sm:$0xff]
    %v745 = vld [vmem:[%s1 + $0x298] sm:$0xff]
    %v746 = vld [vmem:[%s1 + $0x2a0] sm:$0xff]
    %v747 = vld [vmem:[%s1 + $0x2a8] sm:$0xff]
    %v748 = vld [vmem:[%s1 + $0x2b0] sm:$0xff]
    %v749 = vld [vmem:[%s1 + $0x2b8] sm:$0xff]
    %v750 = vld [vmem:[%s1 + $0x2c0] sm:$0xff]
    %v751 = vld [vmem:[%s1 + $0x2c8] sm:$0xff]
    %v752 = vld [vmem:[%s1 + $0x2d0] sm:$0xff]
    %v753 = vld [vmem:[%s1 + $0x2d8] sm:$0xff]
    %v754 = vld [vmem:[%s1 + $0x2e0] sm:$0xff]
    %v755 = vld [vmem:[%s1 + $0x2e8] sm:$0xff]
    %v756 = vld [vmem:[%s1 + $0x2f0] sm:$0xff]
    %v757 = vld [vmem:[%s1 + $0x2f8] sm:$0xff]
    %v758 = vld [vmem:[%s1 + $0x300] sm:$0xff]
    %v759 = vld [vmem:[%s1 + $0x308] sm:$0xff]
    %v760 = vld [vmem:[%s1 + $0x310] sm:$0xff]
    %v761 = vld [vmem:[%s1 + $0x318] sm:$0xff]
    %v762 = vld [vmem:[%s1 + $0x320] sm:$0xff]
    %v763 = vld [vmem:[%s1 + $0x328] sm:$0xff]
    %v764 = vld [vmem:[%s1 + $0x330] sm:$0xff]
    %v765 = vld [vmem:[%s1 + $0x338] sm:$0xff]
    %v766 = vld [vmem:[%s1 + $0x340] sm:$0xff]
    %v767 = vld [vmem:[%s1 + $0x348] sm:$0xff]
    %v768 = vld [vmem:[%s1 + $0x350] sm:$0xff]
    %v769 = vld [vmem:[%s1 + $0x358] sm:$0xff]
    %v770 = vld [vmem:[%s1 + $0x360] sm:$0xff]
    %v771 = vld [vmem:[%s1 + $0x368] sm:$0xff]
    %v772 = vld [vmem:[%s1 + $0x370] sm:$0xff]
    %v773 = vld [vmem:[%s1 + $0x378] sm:$0xff]
    %v774 = vld [vmem:[%s1 + $0x380] sm:$0xff]
    %v775 = vld [vmem:[%s1 + $0x388] sm:$0xff]
    %v776 = vld [vmem:[%s1 + $0x390] sm:$0xff]
    %v777 = vld [vmem:[%s1 + $0x398] sm:$0xff]
    %v778 = vld [vmem:[%s1 + $0x3a0] sm:$0xff]
    %v779 = vld [vmem:[%s1 + $0x3a8] sm:$0xff]
    %v780 = vld [vmem:[%s1 + $0x3b0] sm:$0xff]
    %v781 = vld [vmem:[%s1 + $0x3b8] sm:$0xff]
    %v782 = vld [vmem:[%s1 + $0x3c0] sm:$0xff]
    %v783 = vld [vmem:[%s1 + $0x3c8] sm:$0xff]
    %v784 = vld [vmem:[%s1 + $0x3d0] sm:$0xff]
    %v785 = vld [vmem:[%s1 + $0x3d8] sm:$0xff]
    %v786 = vld [vmem:[%s1 + $0x3e0] sm:$0xff]
    %v787 = vld [vmem:[%s1 + $0x3e8] sm:$0xff]
    %v788 = vld [vmem:[%s1 + $0x3f0] sm:$0xff]
    %v789 = vld [vmem:[%s1 + $0x3f8] sm:$0xff]
    %v790 = vsel %vm149, %v662, 0.0
    %791 = vadd.xlane.f32.xlu0 %v790
    %v792 = vpop.xlane.xlu0 %791
    %v793 = vsel %vm149, %v663, 0.0
    %794 = vadd.xlane.f32.xlu0 %v793
    %v795 = vpop.xlane.xlu0 %794
    %v796 = vsel %vm149, %v664, 0.0
    %797 = vadd.xlane.f32.xlu0 %v796
    %v798 = vpop.xlane.xlu0 %797
    %v799 = vsel %vm149, %v665, 0.0
    %800 = vadd.xlane.f32.xlu0 %v799
    %v801 = vpop.xlane.xlu0 %800
    %v802 = vsel %vm149, %v666, 0.0
    %803 = vadd.xlane.f32.xlu0 %v802
    %v804 = vpop.xlane.xlu0 %803
    %v805 = vsel %vm149, %v667, 0.0
    %806 = vadd.xlane.f32.xlu0 %v805
    %v807 = vpop.xlane.xlu0 %806
    %v808 = vsel %vm149, %v668, 0.0
    %809 = vadd.xlane.f32.xlu0 %v808
    %v810 = vpop.xlane.xlu0 %809
    %v811 = vsel %vm149, %v669, 0.0
    %812 = vadd.xlane.f32.xlu0 %v811
    %v813 = vpop.xlane.xlu0 %812
    %v814 = vsel %vm149, %v670, 0.0
    %815 = vadd.xlane.f32.xlu0 %v814
    %v816 = vpop.xlane.xlu0 %815
    %v817 = vsel %vm149, %v671, 0.0
    %818 = vadd.xlane.f32.xlu0 %v817
    %v819 = vpop.xlane.xlu0 %818
    %v820 = vsel %vm149, %v672, 0.0
    %821 = vadd.xlane.f32.xlu0 %v820
    %v822 = vpop.xlane.xlu0 %821
    %v823 = vsel %vm149, %v673, 0.0
    %824 = vadd.xlane.f32.xlu0 %v823
    %v825 = vpop.xlane.xlu0 %824
    %v826 = vsel %vm149, %v674, 0.0
    %827 = vadd.xlane.f32.xlu0 %v826
    %v828 = vpop.xlane.xlu0 %827
    %v829 = vsel %vm149, %v675, 0.0
    %830 = vadd.xlane.f32.xlu0 %v829
    %v831 = vpop.xlane.xlu0 %830
    %v832 = vsel %vm149, %v676, 0.0
    %833 = vadd.xlane.f32.xlu0 %v832
    %v834 = vpop.xlane.xlu0 %833
    %v835 = vsel %vm149, %v677, 0.0
    %836 = vadd.xlane.f32.xlu0 %v835
    %v837 = vpop.xlane.xlu0 %836
    %v838 = vsel %vm149, %v678, 0.0
    %839 = vadd.xlane.f32.xlu0 %v838
    %v840 = vpop.xlane.xlu0 %839
    %v841 = vsel %vm149, %v679, 0.0
    %842 = vadd.xlane.f32.xlu0 %v841
    %v843 = vpop.xlane.xlu0 %842
    %v844 = vsel %vm149, %v680, 0.0
    %845 = vadd.xlane.f32.xlu0 %v844
    %v846 = vpop.xlane.xlu0 %845
    %v847 = vsel %vm149, %v681, 0.0
    %848 = vadd.xlane.f32.xlu0 %v847
    %v849 = vpop.xlane.xlu0 %848
    %v850 = vsel %vm149, %v682, 0.0
    %851 = vadd.xlane.f32.xlu0 %v850
    %v852 = vpop.xlane.xlu0 %851
    %v853 = vsel %vm149, %v683, 0.0
    %854 = vadd.xlane.f32.xlu0 %v853
    %v855 = vpop.xlane.xlu0 %854
    %v856 = vsel %vm149, %v684, 0.0
    %857 = vadd.xlane.f32.xlu0 %v856
    %v858 = vpop.xlane.xlu0 %857
    %v859 = vsel %vm149, %v685, 0.0
    %860 = vadd.xlane.f32.xlu0 %v859
    %v861 = vpop.xlane.xlu0 %860
    %v862 = vsel %vm149, %v686, 0.0
    %863 = vadd.xlane.f32.xlu0 %v862
    %v864 = vpop.xlane.xlu0 %863
    %v865 = vsel %vm149, %v687, 0.0
    %866 = vadd.xlane.f32.xlu0 %v865
    %v867 = vpop.xlane.xlu0 %866
    %v868 = vsel %vm149, %v688, 0.0
    %869 = vadd.xlane.f32.xlu0 %v868
    %v870 = vpop.xlane.xlu0 %869
    %v871 = vsel %vm149, %v689, 0.0
    %872 = vadd.xlane.f32.xlu0 %v871
    %v873 = vpop.xlane.xlu0 %872
    %v874 = vsel %vm149, %v690, 0.0
    %875 = vadd.xlane.f32.xlu0 %v874
    %v876 = vpop.xlane.xlu0 %875
    %v877 = vsel %vm149, %v691, 0.0
    %878 = vadd.xlane.f32.xlu0 %v877
    %v879 = vpop.xlane.xlu0 %878
    %v880 = vsel %vm149, %v692, 0.0
    %881 = vadd.xlane.f32.xlu0 %v880
    %v882 = vpop.xlane.xlu0 %881
    %v883 = vsel %vm149, %v693, 0.0
    %884 = vadd.xlane.f32.xlu0 %v883
    %v885 = vpop.xlane.xlu0 %884
    %v886 = vsel %vm149, %v694, 0.0
    %887 = vadd.xlane.f32.xlu0 %v886
    %v888 = vpop.xlane.xlu0 %887
    %v889 = vsel %vm149, %v695, 0.0
    %890 = vadd.xlane.f32.xlu0 %v889
    %v891 = vpop.xlane.xlu0 %890
    %v892 = vsel %vm149, %v696, 0.0
    %893 = vadd.xlane.f32.xlu0 %v892
    %v894 = vpop.xlane.xlu0 %893
    %v895 = vsel %vm149, %v697, 0.0
    %896 = vadd.xlane.f32.xlu0 %v895
    %v897 = vpop.xlane.xlu0 %896
    %v898 = vsel %vm149, %v698, 0.0
    %899 = vadd.xlane.f32.xlu0 %v898
    %v900 = vpop.xlane.xlu0 %899
    %v901 = vsel %vm149, %v699, 0.0
    %902 = vadd.xlane.f32.xlu0 %v901
    %v903 = vpop.xlane.xlu0 %902
    %v904 = vsel %vm149, %v700, 0.0
    %905 = vadd.xlane.f32.xlu0 %v904
    %v906 = vpop.xlane.xlu0 %905
    %v907 = vsel %vm149, %v701, 0.0
    %908 = vadd.xlane.f32.xlu0 %v907
    %v909 = vpop.xlane.xlu0 %908
    %v910 = vsel %vm149, %v702, 0.0
    %911 = vadd.xlane.f32.xlu0 %v910
    %v912 = vpop.xlane.xlu0 %911
    %v913 = vsel %vm149, %v703, 0.0
    %914 = vadd.xlane.f32.xlu0 %v913
    %v915 = vpop.xlane.xlu0 %914
    %v916 = vsel %vm149, %v704, 0.0
    %917 = vadd.xlane.f32.xlu0 %v916
    %v918 = vpop.xlane.xlu0 %917
    %v919 = vsel %vm149, %v705, 0.0
    %920 = vadd.xlane.f32.xlu0 %v919
    %v921 = vpop.xlane.xlu0 %920
    %v922 = vsel %vm149, %v706, 0.0
    %923 = vadd.xlane.f32.xlu0 %v922
    %v924 = vpop.xlane.xlu0 %923
    %v925 = vsel %vm149, %v707, 0.0
    %926 = vadd.xlane.f32.xlu0 %v925
    %v927 = vpop.xlane.xlu0 %926
    %v928 = vsel %vm149, %v708, 0.0
    %929 = vadd.xlane.f32.xlu0 %v928
    %v930 = vpop.xlane.xlu0 %929
    %v931 = vsel %vm149, %v709, 0.0
    %932 = vadd.xlane.f32.xlu0 %v931
    %v933 = vpop.xlane.xlu0 %932
    %v934 = vsel %vm149, %v710, 0.0
    %935 = vadd.xlane.f32.xlu0 %v934
    %v936 = vpop.xlane.xlu0 %935
    %v937 = vsel %vm149, %v711, 0.0
    %938 = vadd.xlane.f32.xlu0 %v937
    %v939 = vpop.xlane.xlu0 %938
    %v940 = vsel %vm149, %v712, 0.0
    %941 = vadd.xlane.f32.xlu0 %v940
    %v942 = vpop.xlane.xlu0 %941
    %v943 = vsel %vm149, %v713, 0.0
    %944 = vadd.xlane.f32.xlu0 %v943
    %v945 = vpop.xlane.xlu0 %944
    %v946 = vsel %vm149, %v714, 0.0
    %947 = vadd.xlane.f32.xlu0 %v946
    %v948 = vpop.xlane.xlu0 %947
    %v949 = vsel %vm149, %v715, 0.0
    %950 = vadd.xlane.f32.xlu0 %v949
    %v951 = vpop.xlane.xlu0 %950
    %v952 = vsel %vm149, %v716, 0.0
    %953 = vadd.xlane.f32.xlu0 %v952
    %v954 = vpop.xlane.xlu0 %953
    %v955 = vsel %vm149, %v717, 0.0
    %956 = vadd.xlane.f32.xlu0 %v955
    %v957 = vpop.xlane.xlu0 %956
    %v958 = vsel %vm149, %v718, 0.0
    %959 = vadd.xlane.f32.xlu0 %v958
    %v960 = vpop.xlane.xlu0 %959
    %v961 = vsel %vm149, %v719, 0.0
    %962 = vadd.xlane.f32.xlu0 %v961
    %v963 = vpop.xlane.xlu0 %962
    %v964 = vsel %vm149, %v720, 0.0
    %965 = vadd.xlane.f32.xlu0 %v964
    %v966 = vpop.xlane.xlu0 %965
    %v967 = vsel %vm149, %v721, 0.0
    %968 = vadd.xlane.f32.xlu0 %v967
    %v969 = vpop.xlane.xlu0 %968
    %v970 = vsel %vm149, %v722, 0.0
    %971 = vadd.xlane.f32.xlu0 %v970
    %v972 = vpop.xlane.xlu0 %971
    %v973 = vsel %vm149, %v723, 0.0
    %974 = vadd.xlane.f32.xlu0 %v973
    %v975 = vpop.xlane.xlu0 %974
    %v976 = vsel %vm149, %v724, 0.0
    %977 = vadd.xlane.f32.xlu0 %v976
    %v978 = vpop.xlane.xlu0 %977
    %v979 = vsel %vm149, %v725, 0.0
    %980 = vadd.xlane.f32.xlu0 %v979
    %v981 = vpop.xlane.xlu0 %980
    %v982 = vsel %vm149, %v726, 0.0
    %983 = vadd.xlane.f32.xlu0 %v982
    %v984 = vpop.xlane.xlu0 %983
    %v985 = vsel %vm149, %v727, 0.0
    %986 = vadd.xlane.f32.xlu0 %v985
    %v987 = vpop.xlane.xlu0 %986
    %v988 = vsel %vm149, %v728, 0.0
    %989 = vadd.xlane.f32.xlu0 %v988
    %v990 = vpop.xlane.xlu0 %989
    %v991 = vsel %vm149, %v729, 0.0
    %992 = vadd.xlane.f32.xlu0 %v991
    %v993 = vpop.xlane.xlu0 %992
    %v994 = vsel %vm149, %v730, 0.0
    %995 = vadd.xlane.f32.xlu0 %v994
    %v996 = vpop.xlane.xlu0 %995
    %v997 = vsel %vm149, %v731, 0.0
    %998 = vadd.xlane.f32.xlu0 %v997
    %v999 = vpop.xlane.xlu0 %998
    %v1000 = vsel %vm149, %v732, 0.0
    %1001 = vadd.xlane.f32.xlu0 %v1000
    %v1002 = vpop.xlane.xlu0 %1001
    %v1003 = vsel %vm149, %v733, 0.0
    %1004 = vadd.xlane.f32.xlu0 %v1003
    %v1005 = vpop.xlane.xlu0 %1004
    %v1006 = vsel %vm149, %v734, 0.0
    %1007 = vadd.xlane.f32.xlu0 %v1006
    %v1008 = vpop.xlane.xlu0 %1007
    %v1009 = vsel %vm149, %v735, 0.0
    %1010 = vadd.xlane.f32.xlu0 %v1009
    %v1011 = vpop.xlane.xlu0 %1010
    %v1012 = vsel %vm149, %v736, 0.0
    %1013 = vadd.xlane.f32.xlu0 %v1012
    %v1014 = vpop.xlane.xlu0 %1013
    %v1015 = vsel %vm149, %v737, 0.0
    %1016 = vadd.xlane.f32.xlu0 %v1015
    %v1017 = vpop.xlane.xlu0 %1016
    %v1018 = vsel %vm149, %v738, 0.0
    %1019 = vadd.xlane.f32.xlu0 %v1018
    %v1020 = vpop.xlane.xlu0 %1019
    %v1021 = vsel %vm149, %v739, 0.0
    %1022 = vadd.xlane.f32.xlu0 %v1021
    %v1023 = vpop.xlane.xlu0 %1022
    %v1024 = vsel %vm149, %v740, 0.0
    %1025 = vadd.xlane.f32.xlu0 %v1024
    %v1026 = vpop.xlane.xlu0 %1025
    %v1027 = vsel %vm149, %v741, 0.0
    %1028 = vadd.xlane.f32.xlu0 %v1027
    %v1029 = vpop.xlane.xlu0 %1028
    %v1030 = vsel %vm149, %v742, 0.0
    %1031 = vadd.xlane.f32.xlu0 %v1030
    %v1032 = vpop.xlane.xlu0 %1031
    %v1033 = vsel %vm149, %v743, 0.0
    %1034 = vadd.xlane.f32.xlu0 %v1033
    %v1035 = vpop.xlane.xlu0 %1034
    %v1036 = vsel %vm149, %v744, 0.0
    %1037 = vadd.xlane.f32.xlu0 %v1036
    %v1038 = vpop.xlane.xlu0 %1037
    %v1039 = vsel %vm149, %v745, 0.0
    %1040 = vadd.xlane.f32.xlu0 %v1039
    %v1041 = vpop.xlane.xlu0 %1040
    %v1042 = vsel %vm149, %v746, 0.0
    %1043 = vadd.xlane.f32.xlu0 %v1042
    %v1044 = vpop.xlane.xlu0 %1043
    %v1045 = vsel %vm149, %v747, 0.0
    %1046 = vadd.xlane.f32.xlu0 %v1045
    %v1047 = vpop.xlane.xlu0 %1046
    %v1048 = vsel %vm149, %v748, 0.0
    %1049 = vadd.xlane.f32.xlu0 %v1048
    %v1050 = vpop.xlane.xlu0 %1049
    %v1051 = vsel %vm149, %v749, 0.0
    %1052 = vadd.xlane.f32.xlu0 %v1051
    %v1053 = vpop.xlane.xlu0 %1052
    %v1054 = vsel %vm149, %v750, 0.0
    %1055 = vadd.xlane.f32.xlu0 %v1054
    %v1056 = vpop.xlane.xlu0 %1055
    %v1057 = vsel %vm149, %v751, 0.0
    %1058 = vadd.xlane.f32.xlu0 %v1057
    %v1059 = vpop.xlane.xlu0 %1058
    %v1060 = vsel %vm149, %v752, 0.0
    %1061 = vadd.xlane.f32.xlu0 %v1060
    %v1062 = vpop.xlane.xlu0 %1061
    %v1063 = vsel %vm149, %v753, 0.0
    %1064 = vadd.xlane.f32.xlu0 %v1063
    %v1065 = vpop.xlane.xlu0 %1064
    %v1066 = vsel %vm149, %v754, 0.0
    %1067 = vadd.xlane.f32.xlu0 %v1066
    %v1068 = vpop.xlane.xlu0 %1067
    %v1069 = vsel %vm149, %v755, 0.0
    %1070 = vadd.xlane.f32.xlu0 %v1069
    %v1071 = vpop.xlane.xlu0 %1070
    %v1072 = vsel %vm149, %v756, 0.0
    %1073 = vadd.xlane.f32.xlu0 %v1072
    %v1074 = vpop.xlane.xlu0 %1073
    %v1075 = vsel %vm149, %v757, 0.0
    %1076 = vadd.xlane.f32.xlu0 %v1075
    %v1077 = vpop.xlane.xlu0 %1076
    %v1078 = vsel %vm149, %v758, 0.0
    %1079 = vadd.xlane.f32.xlu0 %v1078
    %v1080 = vpop.xlane.xlu0 %1079
    %v1081 = vsel %vm149, %v759, 0.0
    %1082 = vadd.xlane.f32.xlu0 %v1081
    %v1083 = vpop.xlane.xlu0 %1082
    %v1084 = vsel %vm149, %v760, 0.0
    %1085 = vadd.xlane.f32.xlu0 %v1084
    %v1086 = vpop.xlane.xlu0 %1085
    %v1087 = vsel %vm149, %v761, 0.0
    %1088 = vadd.xlane.f32.xlu0 %v1087
    %v1089 = vpop.xlane.xlu0 %1088
    %v1090 = vsel %vm149, %v762, 0.0
    %1091 = vadd.xlane.f32.xlu0 %v1090
    %v1092 = vpop.xlane.xlu0 %1091
    %v1093 = vsel %vm149, %v763, 0.0
    %1094 = vadd.xlane.f32.xlu0 %v1093
    %v1095 = vpop.xlane.xlu0 %1094
    %v1096 = vsel %vm149, %v764, 0.0
    %1097 = vadd.xlane.f32.xlu0 %v1096
    %v1098 = vpop.xlane.xlu0 %1097
    %v1099 = vsel %vm149, %v765, 0.0
    %1100 = vadd.xlane.f32.xlu0 %v1099
    %v1101 = vpop.xlane.xlu0 %1100
    %v1102 = vsel %vm149, %v766, 0.0
    %1103 = vadd.xlane.f32.xlu0 %v1102
    %v1104 = vpop.xlane.xlu0 %1103
    %v1105 = vsel %vm149, %v767, 0.0
    %1106 = vadd.xlane.f32.xlu0 %v1105
    %v1107 = vpop.xlane.xlu0 %1106
    %v1108 = vsel %vm149, %v768, 0.0
    %1109 = vadd.xlane.f32.xlu0 %v1108
    %v1110 = vpop.xlane.xlu0 %1109
    %v1111 = vsel %vm149, %v769, 0.0
    %1112 = vadd.xlane.f32.xlu0 %v1111
    %v1113 = vpop.xlane.xlu0 %1112
    %v1114 = vsel %vm149, %v770, 0.0
    %1115 = vadd.xlane.f32.xlu0 %v1114
    %v1116 = vpop.xlane.xlu0 %1115
    %v1117 = vsel %vm149, %v771, 0.0
    %1118 = vadd.xlane.f32.xlu0 %v1117
    %v1119 = vpop.xlane.xlu0 %1118
    %v1120 = vsel %vm149, %v772, 0.0
    %1121 = vadd.xlane.f32.xlu0 %v1120
    %v1122 = vpop.xlane.xlu0 %1121
    %v1123 = vsel %vm149, %v773, 0.0
    %1124 = vadd.xlane.f32.xlu0 %v1123
    %v1125 = vpop.xlane.xlu0 %1124
    %v1126 = vsel %vm149, %v774, 0.0
    %1127 = vadd.xlane.f32.xlu0 %v1126
    %v1128 = vpop.xlane.xlu0 %1127
    %v1129 = vsel %vm149, %v775, 0.0
    %1130 = vadd.xlane.f32.xlu0 %v1129
    %v1131 = vpop.xlane.xlu0 %1130
    %v1132 = vsel %vm149, %v776, 0.0
    %1133 = vadd.xlane.f32.xlu0 %v1132
    %v1134 = vpop.xlane.xlu0 %1133
    %v1135 = vsel %vm149, %v777, 0.0
    %1136 = vadd.xlane.f32.xlu0 %v1135
    %v1137 = vpop.xlane.xlu0 %1136
    %v1138 = vsel %vm149, %v778, 0.0
    %1139 = vadd.xlane.f32.xlu0 %v1138
    %v1140 = vpop.xlane.xlu0 %1139
    %v1141 = vsel %vm149, %v779, 0.0
    %1142 = vadd.xlane.f32.xlu0 %v1141
    %v1143 = vpop.xlane.xlu0 %1142
    %v1144 = vsel %vm149, %v780, 0.0
    %1145 = vadd.xlane.f32.xlu0 %v1144
    %v1146 = vpop.xlane.xlu0 %1145
    %v1147 = vsel %vm149, %v781, 0.0
    %1148 = vadd.xlane.f32.xlu0 %v1147
    %v1149 = vpop.xlane.xlu0 %1148
    %v1150 = vsel %vm149, %v782, 0.0
    %1151 = vadd.xlane.f32.xlu0 %v1150
    %v1152 = vpop.xlane.xlu0 %1151
    %v1153 = vsel %vm149, %v783, 0.0
    %1154 = vadd.xlane.f32.xlu0 %v1153
    %v1155 = vpop.xlane.xlu0 %1154
    %v1156 = vsel %vm149, %v784, 0.0
    %1157 = vadd.xlane.f32.xlu0 %v1156
    %v1158 = vpop.xlane.xlu0 %1157
    %v1159 = vsel %vm149, %v785, 0.0
    %1160 = vadd.xlane.f32.xlu0 %v1159
    %v1161 = vpop.xlane.xlu0 %1160
    %v1162 = vsel %vm149, %v786, 0.0
    %1163 = vadd.xlane.f32.xlu0 %v1162
    %v1164 = vpop.xlane.xlu0 %1163
    %v1165 = vsel %vm149, %v787, 0.0
    %1166 = vadd.xlane.f32.xlu0 %v1165
    %v1167 = vpop.xlane.xlu0 %1166
    %v1168 = vsel %vm149, %v788, 0.0
    %1169 = vadd.xlane.f32.xlu0 %v1168
    %v1170 = vpop.xlane.xlu0 %1169
    %v1171 = vsel %vm149, %v789, 0.0
    %1172 = vadd.xlane.f32.xlu0 %v1171
    %v1173 = vpop.xlane.xlu0 %1172
    %v1174 = vmul.f32 %v792, 0.00069053395
    %v1175 = vmul.f32 %v795, 0.00069053395
    %v1176 = vmul.f32 %v798, 0.00069053395
    %v1177 = vmul.f32 %v801, 0.00069053395
    %v1178 = vmul.f32 %v804, 0.00069053395
    %v1179 = vmul.f32 %v807, 0.00069053395
    %v1180 = vmul.f32 %v810, 0.00069053395
    %v1181 = vmul.f32 %v813, 0.00069053395
    %v1182 = vmul.f32 %v816, 0.00069053395
    %v1183 = vmul.f32 %v819, 0.00069053395
    %v1184 = vmul.f32 %v822, 0.00069053395
    %v1185 = vmul.f32 %v825, 0.00069053395
    %v1186 = vmul.f32 %v828, 0.00069053395
    %v1187 = vmul.f32 %v831, 0.00069053395
    %v1188 = vmul.f32 %v834, 0.00069053395
    %v1189 = vmul.f32 %v837, 0.00069053395
    %v1190 = vmul.f32 %v840, 0.00069053395
    %v1191 = vmul.f32 %v843, 0.00069053395
    %v1192 = vmul.f32 %v846, 0.00069053395
    %v1193 = vmul.f32 %v849, 0.00069053395
    %v1194 = vmul.f32 %v852, 0.00069053395
    %v1195 = vmul.f32 %v855, 0.00069053395
    %v1196 = vmul.f32 %v858, 0.00069053395
    %v1197 = vmul.f32 %v861, 0.00069053395
    %v1198 = vmul.f32 %v864, 0.00069053395
    %v1199 = vmul.f32 %v867, 0.00069053395
    %v1200 = vmul.f32 %v870, 0.00069053395
    %v1201 = vmul.f32 %v873, 0.00069053395
    %v1202 = vmul.f32 %v876, 0.00069053395
    %v1203 = vmul.f32 %v879, 0.00069053395
    %v1204 = vmul.f32 %v882, 0.00069053395
    %v1205 = vmul.f32 %v885, 0.00069053395
    %v1206 = vmul.f32 %v888, 0.00069053395
    %v1207 = vmul.f32 %v891, 0.00069053395
    %v1208 = vmul.f32 %v894, 0.00069053395
    %v1209 = vmul.f32 %v897, 0.00069053395
    %v1210 = vmul.f32 %v900, 0.00069053395
    %v1211 = vmul.f32 %v903, 0.00069053395
    %v1212 = vmul.f32 %v906, 0.00069053395
    %v1213 = vmul.f32 %v909, 0.00069053395
    %v1214 = vmul.f32 %v912, 0.00069053395
    %v1215 = vmul.f32 %v915, 0.00069053395
    %v1216 = vmul.f32 %v918, 0.00069053395
    %v1217 = vmul.f32 %v921, 0.00069053395
    %v1218 = vmul.f32 %v924, 0.00069053395
    %v1219 = vmul.f32 %v927, 0.00069053395
    %v1220 = vmul.f32 %v930, 0.00069053395
    %v1221 = vmul.f32 %v933, 0.00069053395
    %v1222 = vmul.f32 %v936, 0.00069053395
    %v1223 = vmul.f32 %v939, 0.00069053395
    %v1224 = vmul.f32 %v942, 0.00069053395
    %v1225 = vmul.f32 %v945, 0.00069053395
    %v1226 = vmul.f32 %v948, 0.00069053395
    %v1227 = vmul.f32 %v951, 0.00069053395
    %v1228 = vmul.f32 %v954, 0.00069053395
    %v1229 = vmul.f32 %v957, 0.00069053395
    %v1230 = vmul.f32 %v960, 0.00069053395
    %v1231 = vmul.f32 %v963, 0.00069053395
    %v1232 = vmul.f32 %v966, 0.00069053395
    %v1233 = vmul.f32 %v969, 0.00069053395
    %v1234 = vmul.f32 %v972, 0.00069053395
    %v1235 = vmul.f32 %v975, 0.00069053395
    %v1236 = vmul.f32 %v978, 0.00069053395
    %v1237 = vmul.f32 %v981, 0.00069053395
    %v1238 = vmul.f32 %v984, 0.00069053395
    %v1239 = vmul.f32 %v987, 0.00069053395
    %v1240 = vmul.f32 %v990, 0.00069053395
    %v1241 = vmul.f32 %v993, 0.00069053395
    %v1242 = vmul.f32 %v996, 0.00069053395
    %v1243 = vmul.f32 %v999, 0.00069053395
    %v1244 = vmul.f32 %v1002, 0.00069053395
    %v1245 = vmul.f32 %v1005, 0.00069053395
    %v1246 = vmul.f32 %v1008, 0.00069053395
    %v1247 = vmul.f32 %v1011, 0.00069053395
    %v1248 = vmul.f32 %v1014, 0.00069053395
    %v1249 = vmul.f32 %v1017, 0.00069053395
    %v1250 = vmul.f32 %v1020, 0.00069053395
    %v1251 = vmul.f32 %v1023, 0.00069053395
    %v1252 = vmul.f32 %v1026, 0.00069053395
    %v1253 = vmul.f32 %v1029, 0.00069053395
    %v1254 = vmul.f32 %v1032, 0.00069053395
    %v1255 = vmul.f32 %v1035, 0.00069053395
    %v1256 = vmul.f32 %v1038, 0.00069053395
    %v1257 = vmul.f32 %v1041, 0.00069053395
    %v1258 = vmul.f32 %v1044, 0.00069053395
    %v1259 = vmul.f32 %v1047, 0.00069053395
    %v1260 = vmul.f32 %v1050, 0.00069053395
    %v1261 = vmul.f32 %v1053, 0.00069053395
    %v1262 = vmul.f32 %v1056, 0.00069053395
    %v1263 = vmul.f32 %v1059, 0.00069053395
    %v1264 = vmul.f32 %v1062, 0.00069053395
    %v1265 = vmul.f32 %v1065, 0.00069053395
    %v1266 = vmul.f32 %v1068, 0.00069053395
    %v1267 = vmul.f32 %v1071, 0.00069053395
    %v1268 = vmul.f32 %v1074, 0.00069053395
    %v1269 = vmul.f32 %v1077, 0.00069053395
    %v1270 = vmul.f32 %v1080, 0.00069053395
    %v1271 = vmul.f32 %v1083, 0.00069053395
    %v1272 = vmul.f32 %v1086, 0.00069053395
    %v1273 = vmul.f32 %v1089, 0.00069053395
    %v1274 = vmul.f32 %v1092, 0.00069053395
    %v1275 = vmul.f32 %v1095, 0.00069053395
    %v1276 = vmul.f32 %v1098, 0.00069053395
    %v1277 = vmul.f32 %v1101, 0.00069053395
    %v1278 = vmul.f32 %v1104, 0.00069053395
    %v1279 = vmul.f32 %v1107, 0.00069053395
    %v1280 = vmul.f32 %v1110, 0.00069053395
    %v1281 = vmul.f32 %v1113, 0.00069053395
    %v1282 = vmul.f32 %v1116, 0.00069053395
    %v1283 = vmul.f32 %v1119, 0.00069053395
    %v1284 = vmul.f32 %v1122, 0.00069053395
    %v1285 = vmul.f32 %v1125, 0.00069053395
    %v1286 = vmul.f32 %v1128, 0.00069053395
    %v1287 = vmul.f32 %v1131, 0.00069053395
    %v1288 = vmul.f32 %v1134, 0.00069053395
    %v1289 = vmul.f32 %v1137, 0.00069053395
    %v1290 = vmul.f32 %v1140, 0.00069053395
    %v1291 = vmul.f32 %v1143, 0.00069053395
    %v1292 = vmul.f32 %v1146, 0.00069053395
    %v1293 = vmul.f32 %v1149, 0.00069053395
    %v1294 = vmul.f32 %v1152, 0.00069053395
    %v1295 = vmul.f32 %v1155, 0.00069053395
    %v1296 = vmul.f32 %v1158, 0.00069053395
    %v1297 = vmul.f32 %v1161, 0.00069053395
    %v1298 = vmul.f32 %v1164, 0.00069053395
    %v1299 = vmul.f32 %v1167, 0.00069053395
    %v1300 = vmul.f32 %v1170, 0.00069053395
    %v1301 = vmul.f32 %v1173, 0.00069053395
    %v1302 = vld [vmem:[%s2] sm:$0xff]
    %v1303 = vld [vmem:[%s2 + $0x8] sm:$0xff]
    %v1304 = vld [vmem:[%s2 + $0x10] sm:$0xff]
    %v1305 = vld [vmem:[%s2 + $0x18] sm:$0xff]
    %v1306 = vld [vmem:[%s2 + $0x20] sm:$0xff]
    %v1307 = vld [vmem:[%s2 + $0x28] sm:$0xff]
    %v1308 = vld [vmem:[%s2 + $0x30] sm:$0xff]
    %v1309 = vld [vmem:[%s2 + $0x38] sm:$0xff]
    %v1310 = vld [vmem:[%s2 + $0x40] sm:$0xff]
    %v1311 = vld [vmem:[%s2 + $0x48] sm:$0xff]
    %v1312 = vld [vmem:[%s2 + $0x50] sm:$0xff]
    %v1313 = vld [vmem:[%s2 + $0x58] sm:$0xff]
    %v1314 = vld [vmem:[%s2 + $0x60] sm:$0xff]
    %v1315 = vld [vmem:[%s2 + $0x68] sm:$0xff]
    %v1316 = vld [vmem:[%s2 + $0x70] sm:$0xff]
    %v1317 = vld [vmem:[%s2 + $0x78] sm:$0xff]
    %v1318 = vld [vmem:[%s2 + $0x80] sm:$0xff]
    %v1319 = vld [vmem:[%s2 + $0x88] sm:$0xff]
    %v1320 = vld [vmem:[%s2 + $0x90] sm:$0xff]
    %v1321 = vld [vmem:[%s2 + $0x98] sm:$0xff]
    %v1322 = vld [vmem:[%s2 + $0xa0] sm:$0xff]
    %v1323 = vld [vmem:[%s2 + $0xa8] sm:$0xff]
    %v1324 = vld [vmem:[%s2 + $0xb0] sm:$0xff]
    %v1325 = vld [vmem:[%s2 + $0xb8] sm:$0xff]
    %v1326 = vld [vmem:[%s2 + $0xc0] sm:$0xff]
    %v1327 = vld [vmem:[%s2 + $0xc8] sm:$0xff]
    %v1328 = vld [vmem:[%s2 + $0xd0] sm:$0xff]
    %v1329 = vld [vmem:[%s2 + $0xd8] sm:$0xff]
    %v1330 = vld [vmem:[%s2 + $0xe0] sm:$0xff]
    %v1331 = vld [vmem:[%s2 + $0xe8] sm:$0xff]
    %v1332 = vld [vmem:[%s2 + $0xf0] sm:$0xff]
    %v1333 = vld [vmem:[%s2 + $0xf8] sm:$0xff]
    %v1334 = vld [vmem:[%s2 + $0x100] sm:$0xff]
    %v1335 = vld [vmem:[%s2 + $0x108] sm:$0xff]
    %v1336 = vld [vmem:[%s2 + $0x110] sm:$0xff]
    %v1337 = vld [vmem:[%s2 + $0x118] sm:$0xff]
    %v1338 = vld [vmem:[%s2 + $0x120] sm:$0xff]
    %v1339 = vld [vmem:[%s2 + $0x128] sm:$0xff]
    %v1340 = vld [vmem:[%s2 + $0x130] sm:$0xff]
    %v1341 = vld [vmem:[%s2 + $0x138] sm:$0xff]
    %v1342 = vld [vmem:[%s2 + $0x140] sm:$0xff]
    %v1343 = vld [vmem:[%s2 + $0x148] sm:$0xff]
    %v1344 = vld [vmem:[%s2 + $0x150] sm:$0xff]
    %v1345 = vld [vmem:[%s2 + $0x158] sm:$0xff]
    %v1346 = vld [vmem:[%s2 + $0x160] sm:$0xff]
    %v1347 = vld [vmem:[%s2 + $0x168] sm:$0xff]
    %v1348 = vld [vmem:[%s2 + $0x170] sm:$0xff]
    %v1349 = vld [vmem:[%s2 + $0x178] sm:$0xff]
    %v1350 = vld [vmem:[%s2 + $0x180] sm:$0xff]
    %v1351 = vld [vmem:[%s2 + $0x188] sm:$0xff]
    %v1352 = vld [vmem:[%s2 + $0x190] sm:$0xff]
    %v1353 = vld [vmem:[%s2 + $0x198] sm:$0xff]
    %v1354 = vld [vmem:[%s2 + $0x1a0] sm:$0xff]
    %v1355 = vld [vmem:[%s2 + $0x1a8] sm:$0xff]
    %v1356 = vld [vmem:[%s2 + $0x1b0] sm:$0xff]
    %v1357 = vld [vmem:[%s2 + $0x1b8] sm:$0xff]
    %v1358 = vld [vmem:[%s2 + $0x1c0] sm:$0xff]
    %v1359 = vld [vmem:[%s2 + $0x1c8] sm:$0xff]
    %v1360 = vld [vmem:[%s2 + $0x1d0] sm:$0xff]
    %v1361 = vld [vmem:[%s2 + $0x1d8] sm:$0xff]
    %v1362 = vld [vmem:[%s2 + $0x1e0] sm:$0xff]
    %v1363 = vld [vmem:[%s2 + $0x1e8] sm:$0xff]
    %v1364 = vld [vmem:[%s2 + $0x1f0] sm:$0xff]
    %v1365 = vld [vmem:[%s2 + $0x1f8] sm:$0xff]
    %v1494 = vlaneseq
    %v1495 = vand.u32 %v1494, 127
    %v1496 = vperm.slane %v1174, %v1495
    %v1497 = vadd.s32 %v1495, 4294967288
    %v1498 = vperm.slane %v1175, %v1497
    %vm1499 = vcmask 130112
    %v1500 = vsel %vm1499, %v1498, %v1496
    %v1501 = vadd.s32 %v1495, 4294967280
    %v1502 = vperm.slane %v1176, %v1501
    %vm1503 = vcmask 195712
    %v1504 = vsel %vm1503, %v1502, %v1500
    %v1505 = vadd.s32 %v1495, 4294967272
    %v1506 = vperm.slane %v1177, %v1505
    %vm1507 = vcmask 261312
    %v1508 = vsel %vm1507, %v1506, %v1504
    %v1509 = vadd.s32 %v1495, 4294967264
    %v1510 = vperm.slane %v1178, %v1509
    %vm1511 = vcmask 326912
    %v1512 = vsel %vm1511, %v1510, %v1508
    %v1513 = vadd.s32 %v1495, 4294967256
    %v1514 = vperm.slane %v1179, %v1513
    %vm1515 = vcmask 392512
    %v1516 = vsel %vm1515, %v1514, %v1512
    %v1517 = vadd.s32 %v1495, 4294967248
    %v1518 = vperm.slane %v1180, %v1517
    %vm1519 = vcmask 458112
    %v1520 = vsel %vm1519, %v1518, %v1516
    %v1521 = vadd.s32 %v1495, 4294967240
    %v1522 = vperm.slane %v1181, %v1521
    %vm1523 = vcmask 523712
    %v1524 = vsel %vm1523, %v1522, %v1520
    %v1525 = vadd.s32 %v1495, 4294967232
    %v1526 = vperm.slane %v1182, %v1525
    %vm1527 = vcmask 589312
    %v1528 = vsel %vm1527, %v1526, %v1524
    %v1529 = vadd.s32 %v1495, 4294967224
    %v1530 = vperm.slane %v1183, %v1529
    %vm1531 = vcmask 654912
    %v1532 = vsel %vm1531, %v1530, %v1528
    %v1533 = vadd.s32 %v1495, 4294967216
    %v1534 = vperm.slane %v1184, %v1533
    %vm1535 = vcmask 720512
    %v1536 = vsel %vm1535, %v1534, %v1532
    %v1537 = vadd.s32 %v1495, 4294967208
    %v1538 = vperm.slane %v1185, %v1537
    %vm1539 = vcmask 786112
    %v1540 = vsel %vm1539, %v1538, %v1536
    %v1541 = vadd.s32 %v1495, 4294967200
    %v1542 = vperm.slane %v1186, %v1541
    %vm1543 = vcmask 851712
    %v1544 = vsel %vm1543, %v1542, %v1540
    %v1545 = vadd.s32 %v1495, 4294967192
    %v1546 = vperm.slane %v1187, %v1545
    %vm1547 = vcmask 917312
    %v1548 = vsel %vm1547, %v1546, %v1544
    %v1549 = vadd.s32 %v1495, 4294967184
    %v1550 = vperm.slane %v1188, %v1549
    %vm1551 = vcmask 982912
    %v1552 = vsel %vm1551, %v1550, %v1548
    %v1553 = vadd.s32 %v1495, 4294967176
    %v1554 = vperm.slane %v1189, %v1553
    %vm1555 = vcmask 1048512
    %v1556 = vsel %vm1555, %v1554, %v1552
    %v1557 = vperm.slane %v1190, %v1495
    %v1558 = vperm.slane %v1191, %v1497
    %v1559 = vsel %vm1499, %v1558, %v1557
    %v1560 = vperm.slane %v1192, %v1501
    %v1561 = vsel %vm1503, %v1560, %v1559
    %v1562 = vperm.slane %v1193, %v1505
    %v1563 = vsel %vm1507, %v1562, %v1561
    %v1564 = vperm.slane %v1194, %v1509
    %v1565 = vsel %vm1511, %v1564, %v1563
    %v1566 = vperm.slane %v1195, %v1513
    %v1567 = vsel %vm1515, %v1566, %v1565
    %v1568 = vperm.slane %v1196, %v1517
    %v1569 = vsel %vm1519, %v1568, %v1567
    %v1570 = vperm.slane %v1197, %v1521
    %v1571 = vsel %vm1523, %v1570, %v1569
    %v1572 = vperm.slane %v1198, %v1525
    %v1573 = vsel %vm1527, %v1572, %v1571
    %v1574 = vperm.slane %v1199, %v1529
    %v1575 = vsel %vm1531, %v1574, %v1573
    %v1576 = vperm.slane %v1200, %v1533
    %v1577 = vsel %vm1535, %v1576, %v1575
    %v1578 = vperm.slane %v1201, %v1537
    %v1579 = vsel %vm1539, %v1578, %v1577
    %v1580 = vperm.slane %v1202, %v1541
    %v1581 = vsel %vm1543, %v1580, %v1579
    %v1582 = vperm.slane %v1203, %v1545
    %v1583 = vsel %vm1547, %v1582, %v1581
    %v1584 = vperm.slane %v1204, %v1549
    %v1585 = vsel %vm1551, %v1584, %v1583
    %v1586 = vperm.slane %v1205, %v1553
    %v1587 = vsel %vm1555, %v1586, %v1585
    %v1588 = vperm.slane %v1206, %v1495
    %v1589 = vperm.slane %v1207, %v1497
    %v1590 = vsel %vm1499, %v1589, %v1588
    %v1591 = vperm.slane %v1208, %v1501
    %v1592 = vsel %vm1503, %v1591, %v1590
    %v1593 = vperm.slane %v1209, %v1505
    %v1594 = vsel %vm1507, %v1593, %v1592
    %v1595 = vperm.slane %v1210, %v1509
    %v1596 = vsel %vm1511, %v1595, %v1594
    %v1597 = vperm.slane %v1211, %v1513
    %v1598 = vsel %vm1515, %v1597, %v1596
    %v1599 = vperm.slane %v1212, %v1517
    %v1600 = vsel %vm1519, %v1599, %v1598
    %v1601 = vperm.slane %v1213, %v1521
    %v1602 = vsel %vm1523, %v1601, %v1600
    %v1603 = vperm.slane %v1214, %v1525
    %v1604 = vsel %vm1527, %v1603, %v1602
    %v1605 = vperm.slane %v1215, %v1529
    %v1606 = vsel %vm1531, %v1605, %v1604
    %v1607 = vperm.slane %v1216, %v1533
    %v1608 = vsel %vm1535, %v1607, %v1606
    %v1609 = vperm.slane %v1217, %v1537
    %v1610 = vsel %vm1539, %v1609, %v1608
    %v1611 = vperm.slane %v1218, %v1541
    %v1612 = vsel %vm1543, %v1611, %v1610
    %v1613 = vperm.slane %v1219, %v1545
    %v1614 = vsel %vm1547, %v1613, %v1612
    %v1615 = vperm.slane %v1220, %v1549
    %v1616 = vsel %vm1551, %v1615, %v1614
    %v1617 = vperm.slane %v1221, %v1553
    %v1618 = vsel %vm1555, %v1617, %v1616
    %v1619 = vperm.slane %v1222, %v1495
    %v1620 = vperm.slane %v1223, %v1497
    %v1621 = vsel %vm1499, %v1620, %v1619
    %v1622 = vperm.slane %v1224, %v1501
    %v1623 = vsel %vm1503, %v1622, %v1621
    %v1624 = vperm.slane %v1225, %v1505
    %v1625 = vsel %vm1507, %v1624, %v1623
    %v1626 = vperm.slane %v1226, %v1509
    %v1627 = vsel %vm1511, %v1626, %v1625
    %v1628 = vperm.slane %v1227, %v1513
    %v1629 = vsel %vm1515, %v1628, %v1627
    %v1630 = vperm.slane %v1228, %v1517
    %v1631 = vsel %vm1519, %v1630, %v1629
    %v1632 = vperm.slane %v1229, %v1521
    %v1633 = vsel %vm1523, %v1632, %v1631
    %v1634 = vperm.slane %v1230, %v1525
    %v1635 = vsel %vm1527, %v1634, %v1633
    %v1636 = vperm.slane %v1231, %v1529
    %v1637 = vsel %vm1531, %v1636, %v1635
    %v1638 = vperm.slane %v1232, %v1533
    %v1639 = vsel %vm1535, %v1638, %v1637
    %v1640 = vperm.slane %v1233, %v1537
    %v1641 = vsel %vm1539, %v1640, %v1639
    %v1642 = vperm.slane %v1234, %v1541
    %v1643 = vsel %vm1543, %v1642, %v1641
    %v1644 = vperm.slane %v1235, %v1545
    %v1645 = vsel %vm1547, %v1644, %v1643
    %v1646 = vperm.slane %v1236, %v1549
    %v1647 = vsel %vm1551, %v1646, %v1645
    %v1648 = vperm.slane %v1237, %v1553
    %v1649 = vsel %vm1555, %v1648, %v1647
    %v1650 = vperm.slane %v1238, %v1495
    %v1651 = vperm.slane %v1239, %v1497
    %v1652 = vsel %vm1499, %v1651, %v1650
    %v1653 = vperm.slane %v1240, %v1501
    %v1654 = vsel %vm1503, %v1653, %v1652
    %v1655 = vperm.slane %v1241, %v1505
    %v1656 = vsel %vm1507, %v1655, %v1654
    %v1657 = vperm.slane %v1242, %v1509
    %v1658 = vsel %vm1511, %v1657, %v1656
    %v1659 = vperm.slane %v1243, %v1513
    %v1660 = vsel %vm1515, %v1659, %v1658
    %v1661 = vperm.slane %v1244, %v1517
    %v1662 = vsel %vm1519, %v1661, %v1660
    %v1663 = vperm.slane %v1245, %v1521
    %v1664 = vsel %vm1523, %v1663, %v1662
    %v1665 = vperm.slane %v1246, %v1525
    %v1666 = vsel %vm1527, %v1665, %v1664
    %v1667 = vperm.slane %v1247, %v1529
    %v1668 = vsel %vm1531, %v1667, %v1666
    %v1669 = vperm.slane %v1248, %v1533
    %v1670 = vsel %vm1535, %v1669, %v1668
    %v1671 = vperm.slane %v1249, %v1537
    %v1672 = vsel %vm1539, %v1671, %v1670
    %v1673 = vperm.slane %v1250, %v1541
    %v1674 = vsel %vm1543, %v1673, %v1672
    %v1675 = vperm.slane %v1251, %v1545
    %v1676 = vsel %vm1547, %v1675, %v1674
    %v1677 = vperm.slane %v1252, %v1549
    %v1678 = vsel %vm1551, %v1677, %v1676
    %v1679 = vperm.slane %v1253, %v1553
    %v1680 = vsel %vm1555, %v1679, %v1678
    %v1681 = vperm.slane %v1254, %v1495
    %v1682 = vperm.slane %v1255, %v1497
    %v1683 = vsel %vm1499, %v1682, %v1681
    %v1684 = vperm.slane %v1256, %v1501
    %v1685 = vsel %vm1503, %v1684, %v1683
    %v1686 = vperm.slane %v1257, %v1505
    %v1687 = vsel %vm1507, %v1686, %v1685
    %v1688 = vperm.slane %v1258, %v1509
    %v1689 = vsel %vm1511, %v1688, %v1687
    %v1690 = vperm.slane %v1259, %v1513
    %v1691 = vsel %vm1515, %v1690, %v1689
    %v1692 = vperm.slane %v1260, %v1517
    %v1693 = vsel %vm1519, %v1692, %v1691
    %v1694 = vperm.slane %v1261, %v1521
    %v1695 = vsel %vm1523, %v1694, %v1693
    %v1696 = vperm.slane %v1262, %v1525
    %v1697 = vsel %vm1527, %v1696, %v1695
    %v1698 = vperm.slane %v1263, %v1529
    %v1699 = vsel %vm1531, %v1698, %v1697
    %v1700 = vperm.slane %v1264, %v1533
    %v1701 = vsel %vm1535, %v1700, %v1699
    %v1702 = vperm.slane %v1265, %v1537
    %v1703 = vsel %vm1539, %v1702, %v1701
    %v1704 = vperm.slane %v1266, %v1541
    %v1705 = vsel %vm1543, %v1704, %v1703
    %v1706 = vperm.slane %v1267, %v1545
    %v1707 = vsel %vm1547, %v1706, %v1705
    %v1708 = vperm.slane %v1268, %v1549
    %v1709 = vsel %vm1551, %v1708, %v1707
    %v1710 = vperm.slane %v1269, %v1553
    %v1711 = vsel %vm1555, %v1710, %v1709
    %v1712 = vperm.slane %v1270, %v1495
    %v1713 = vperm.slane %v1271, %v1497
    %v1714 = vsel %vm1499, %v1713, %v1712
    %v1715 = vperm.slane %v1272, %v1501
    %v1716 = vsel %vm1503, %v1715, %v1714
    %v1717 = vperm.slane %v1273, %v1505
    %v1718 = vsel %vm1507, %v1717, %v1716
    %v1719 = vperm.slane %v1274, %v1509
    %v1720 = vsel %vm1511, %v1719, %v1718
    %v1721 = vperm.slane %v1275, %v1513
    %v1722 = vsel %vm1515, %v1721, %v1720
    %v1723 = vperm.slane %v1276, %v1517
    %v1724 = vsel %vm1519, %v1723, %v1722
    %v1725 = vperm.slane %v1277, %v1521
    %v1726 = vsel %vm1523, %v1725, %v1724
    %v1727 = vperm.slane %v1278, %v1525
    %v1728 = vsel %vm1527, %v1727, %v1726
    %v1729 = vperm.slane %v1279, %v1529
    %v1730 = vsel %vm1531, %v1729, %v1728
    %v1731 = vperm.slane %v1280, %v1533
    %v1732 = vsel %vm1535, %v1731, %v1730
    %v1733 = vperm.slane %v1281, %v1537
    %v1734 = vsel %vm1539, %v1733, %v1732
    %v1735 = vperm.slane %v1282, %v1541
    %v1736 = vsel %vm1543, %v1735, %v1734
    %v1737 = vperm.slane %v1283, %v1545
    %v1738 = vsel %vm1547, %v1737, %v1736
    %v1739 = vperm.slane %v1284, %v1549
    %v1740 = vsel %vm1551, %v1739, %v1738
    %v1741 = vperm.slane %v1285, %v1553
    %v1742 = vsel %vm1555, %v1741, %v1740
    %v1743 = vperm.slane %v1286, %v1495
    %v1744 = vperm.slane %v1287, %v1497
    %v1745 = vsel %vm1499, %v1744, %v1743
    %v1746 = vperm.slane %v1288, %v1501
    %v1747 = vsel %vm1503, %v1746, %v1745
    %v1748 = vperm.slane %v1289, %v1505
    %v1749 = vsel %vm1507, %v1748, %v1747
    %v1750 = vperm.slane %v1290, %v1509
    %v1751 = vsel %vm1511, %v1750, %v1749
    %v1752 = vperm.slane %v1291, %v1513
    %v1753 = vsel %vm1515, %v1752, %v1751
    %v1754 = vperm.slane %v1292, %v1517
    %v1755 = vsel %vm1519, %v1754, %v1753
    %v1756 = vperm.slane %v1293, %v1521
    %v1757 = vsel %vm1523, %v1756, %v1755
    %v1758 = vperm.slane %v1294, %v1525
    %v1759 = vsel %vm1527, %v1758, %v1757
    %v1760 = vperm.slane %v1295, %v1529
    %v1761 = vsel %vm1531, %v1760, %v1759
    %v1762 = vperm.slane %v1296, %v1533
    %v1763 = vsel %vm1535, %v1762, %v1761
    %v1764 = vperm.slane %v1297, %v1537
    %v1765 = vsel %vm1539, %v1764, %v1763
    %v1766 = vperm.slane %v1298, %v1541
    %v1767 = vsel %vm1543, %v1766, %v1765
    %v1768 = vperm.slane %v1299, %v1545
    %v1769 = vsel %vm1547, %v1768, %v1767
    %v1770 = vperm.slane %v1300, %v1549
    %v1771 = vsel %vm1551, %v1770, %v1769
    %v1772 = vperm.slane %v1301, %v1553
    %v1773 = vsel %vm1555, %v1772, %v1771
    %vm1774 = vcmask 1041409
    %v1775 = vsel %vm1774, %v1680, %v1556
    %v1776 = vsel %vm1774, %v1711, %v1587
    %v1777 = vsel %vm1774, %v1742, %v1618
    %v1778 = vsel %vm1774, %v1773, %v1649
    %1783 = vmatpush.msra.mxu0 %v1317
    %1784 = vmatpush.msra.mxu0 %v1316
    %1785 = vmatpush.msra.mxu0 %v1315
    %1786 = vmatpush.msra.mxu0 %v1314
    %1787 = vmatpush.msra.mxu0 %v1313
    %1788 = vmatpush.msra.mxu0 %v1312
    %1789 = vmatpush.msra.mxu0 %v1311
    %1790 = vmatpush.msra.mxu0 %v1310
    %1791 = vmatpush.msra.mxu0 %v1309
    %1792 = vmatpush.msra.mxu0 %v1308
    %1793 = vmatpush.msra.mxu0 %v1307
    %1794 = vmatpush.msra.mxu0 %v1306
    %1795 = vmatpush.msra.mxu0 %v1305
    %1796 = vmatpush.msra.mxu0 %v1304
    %1797 = vmatpush.msra.mxu0 %v1303
    %1798 = vmatpush.msra.mxu0 %v1302
    %1799 = vmatmul.f32.gmra.mxu0 %v1775
    %v1800 = vpop.f32.mrf.mxu0
    %v1801 = vadd.f32 0.0, %v1800
    %1802 = vdwg.mxu0
    %1803 = vmatpush.msra.mxu0 %v1333
    %1804 = vmatpush.msra.mxu0 %v1332
    %1805 = vmatpush.msra.mxu0 %v1331
    %1806 = vmatpush.msra.mxu0 %v1330
    %1807 = vmatpush.msra.mxu0 %v1329
    %1808 = vmatpush.msra.mxu0 %v1328
    %1809 = vmatpush.msra.mxu0 %v1327
    %1810 = vmatpush.msra.mxu0 %v1326
    %1811 = vmatpush.msra.mxu0 %v1325
    %1812 = vmatpush.msra.mxu0 %v1324
    %1813 = vmatpush.msra.mxu0 %v1323
    %1814 = vmatpush.msra.mxu0 %v1322
    %1815 = vmatpush.msra.mxu0 %v1321
    %1816 = vmatpush.msra.mxu0 %v1320
    %1817 = vmatpush.msra.mxu0 %v1319
    %1818 = vmatpush.msra.mxu0 %v1318
    %1819 = vmatmul.f32.gmra.mxu0 %v1776
    %v1820 = vpop.f32.mrf.mxu0
    %v1821 = vadd.f32 %v1801, %v1820
    %1822 = vdwg.mxu0
    %1823 = vmatpush.msra.mxu0 %v1349
    %1824 = vmatpush.msra.mxu0 %v1348
    %1825 = vmatpush.msra.mxu0 %v1347
    %1826 = vmatpush.msra.mxu0 %v1346
    %1827 = vmatpush.msra.mxu0 %v1345
    %1828 = vmatpush.msra.mxu0 %v1344
    %1829 = vmatpush.msra.mxu0 %v1343
    %1830 = vmatpush.msra.mxu0 %v1342
    %1831 = vmatpush.msra.mxu0 %v1341
    %1832 = vmatpush.msra.mxu0 %v1340
    %1833 = vmatpush.msra.mxu0 %v1339
    %1834 = vmatpush.msra.mxu0 %v1338
    %1835 = vmatpush.msra.mxu0 %v1337
    %1836 = vmatpush.msra.mxu0 %v1336
    %1837 = vmatpush.msra.mxu0 %v1335
    %1838 = vmatpush.msra.mxu0 %v1334
    %1839 = vmatmul.f32.gmra.mxu0 %v1777
    %v1840 = vpop.f32.mrf.mxu0
    %v1841 = vadd.f32 %v1821, %v1840
    %1842 = vdwg.mxu0
    %1843 = vmatpush.msra.mxu0 %v1365
    %1844 = vmatpush.msra.mxu0 %v1364
    %1845 = vmatpush.msra.mxu0 %v1363
    %1846 = vmatpush.msra.mxu0 %v1362
    %1847 = vmatpush.msra.mxu0 %v1361
    %1848 = vmatpush.msra.mxu0 %v1360
    %1849 = vmatpush.msra.mxu0 %v1359
    %1850 = vmatpush.msra.mxu0 %v1358
    %1851 = vmatpush.msra.mxu0 %v1357
    %1852 = vmatpush.msra.mxu0 %v1356
    %1853 = vmatpush.msra.mxu0 %v1355
    %1854 = vmatpush.msra.mxu0 %v1354
    %1855 = vmatpush.msra.mxu0 %v1353
    %1856 = vmatpush.msra.mxu0 %v1352
    %1857 = vmatpush.msra.mxu0 %v1351
    %1858 = vmatpush.msra.mxu0 %v1350
    %1859 = vmatmul.f32.gmra.mxu0 %v1778
    %v1860 = vpop.f32.mrf.mxu0
    %v1861 = vadd.f32 %v1841, %v1860
    %1862 = vdwg.mxu0
    %v1863 = vld [vmem:[%s3] sm:$0x1]
    %v1865 = vperm.slane %v1863, 0
    %v1995 = vperm.slane %v534, %v1495
    %v1996 = vperm.slane %v535, %v1497
    %v1997 = vsel %vm1499, %v1996, %v1995
    %v1998 = vperm.slane %v536, %v1501
    %v1999 = vsel %vm1503, %v1998, %v1997
    %v2000 = vperm.slane %v537, %v1505
    %v2001 = vsel %vm1507, %v2000, %v1999
    %v2002 = vperm.slane %v538, %v1509
    %v2003 = vsel %vm1511, %v2002, %v2001
    %v2004 = vperm.slane %v539, %v1513
    %v2005 = vsel %vm1515, %v2004, %v2003
    %v2006 = vperm.slane %v540, %v1517
    %v2007 = vsel %vm1519, %v2006, %v2005
    %v2008 = vperm.slane %v541, %v1521
    %v2009 = vsel %vm1523, %v2008, %v2007
    %v2010 = vperm.slane %v542, %v1525
    %v2011 = vsel %vm1527, %v2010, %v2009
    %v2012 = vperm.slane %v543, %v1529
    %v2013 = vsel %vm1531, %v2012, %v2011
    %v2014 = vperm.slane %v544, %v1533
    %v2015 = vsel %vm1535, %v2014, %v2013
    %v2016 = vperm.slane %v545, %v1537
    %v2017 = vsel %vm1539, %v2016, %v2015
    %v2018 = vperm.slane %v546, %v1541
    %v2019 = vsel %vm1543, %v2018, %v2017
    %v2020 = vperm.slane %v547, %v1545
    %v2021 = vsel %vm1547, %v2020, %v2019
    %v2022 = vperm.slane %v548, %v1549
    %v2023 = vsel %vm1551, %v2022, %v2021
    %v2024 = vperm.slane %v549, %v1553
    %v2025 = vsel %vm1555, %v2024, %v2023
    %v2026 = vperm.slane %v550, %v1495
    %v2027 = vperm.slane %v551, %v1497
    %v2028 = vsel %vm1499, %v2027, %v2026
    %v2029 = vperm.slane %v552, %v1501
    %v2030 = vsel %vm1503, %v2029, %v2028
    %v2031 = vperm.slane %v553, %v1505
    %v2032 = vsel %vm1507, %v2031, %v2030
    %v2033 = vperm.slane %v554, %v1509
    %v2034 = vsel %vm1511, %v2033, %v2032
    %v2035 = vperm.slane %v555, %v1513
    %v2036 = vsel %vm1515, %v2035, %v2034
    %v2037 = vperm.slane %v556, %v1517
    %v2038 = vsel %vm1519, %v2037, %v2036
    %v2039 = vperm.slane %v557, %v1521
    %v2040 = vsel %vm1523, %v2039, %v2038
    %v2041 = vperm.slane %v558, %v1525
    %v2042 = vsel %vm1527, %v2041, %v2040
    %v2043 = vperm.slane %v559, %v1529
    %v2044 = vsel %vm1531, %v2043, %v2042
    %v2045 = vperm.slane %v560, %v1533
    %v2046 = vsel %vm1535, %v2045, %v2044
    %v2047 = vperm.slane %v561, %v1537
    %v2048 = vsel %vm1539, %v2047, %v2046
    %v2049 = vperm.slane %v562, %v1541
    %v2050 = vsel %vm1543, %v2049, %v2048
    %v2051 = vperm.slane %v563, %v1545
    %v2052 = vsel %vm1547, %v2051, %v2050
    %v2053 = vperm.slane %v564, %v1549
    %v2054 = vsel %vm1551, %v2053, %v2052
    %v2055 = vperm.slane %v565, %v1553
    %v2056 = vsel %vm1555, %v2055, %v2054
    %v2057 = vperm.slane %v566, %v1495
    %v2058 = vperm.slane %v567, %v1497
    %v2059 = vsel %vm1499, %v2058, %v2057
    %v2060 = vperm.slane %v568, %v1501
    %v2061 = vsel %vm1503, %v2060, %v2059
    %v2062 = vperm.slane %v569, %v1505
    %v2063 = vsel %vm1507, %v2062, %v2061
    %v2064 = vperm.slane %v570, %v1509
    %v2065 = vsel %vm1511, %v2064, %v2063
    %v2066 = vperm.slane %v571, %v1513
    %v2067 = vsel %vm1515, %v2066, %v2065
    %v2068 = vperm.slane %v572, %v1517
    %v2069 = vsel %vm1519, %v2068, %v2067
    %v2070 = vperm.slane %v573, %v1521
    %v2071 = vsel %vm1523, %v2070, %v2069
    %v2072 = vperm.slane %v574, %v1525
    %v2073 = vsel %vm1527, %v2072, %v2071
    %v2074 = vperm.slane %v575, %v1529
    %v2075 = vsel %vm1531, %v2074, %v2073
    %v2076 = vperm.slane %v576, %v1533
    %v2077 = vsel %vm1535, %v2076, %v2075
    %v2078 = vperm.slane %v577, %v1537
    %v2079 = vsel %vm1539, %v2078, %v2077
    %v2080 = vperm.slane %v578, %v1541
    %v2081 = vsel %vm1543, %v2080, %v2079
    %v2082 = vperm.slane %v579, %v1545
    %v2083 = vsel %vm1547, %v2082, %v2081
    %v2084 = vperm.slane %v580, %v1549
    %v2085 = vsel %vm1551, %v2084, %v2083
    %v2086 = vperm.slane %v581, %v1553
    %v2087 = vsel %vm1555, %v2086, %v2085
    %v2088 = vperm.slane %v582, %v1495
    %v2089 = vperm.slane %v583, %v1497
    %v2090 = vsel %vm1499, %v2089, %v2088
    %v2091 = vperm.slane %v584, %v1501
    %v2092 = vsel %vm1503, %v2091, %v2090
    %v2093 = vperm.slane %v585, %v1505
    %v2094 = vsel %vm1507, %v2093, %v2092
    %v2095 = vperm.slane %v586, %v1509
    %v2096 = vsel %vm1511, %v2095, %v2094
    %v2097 = vperm.slane %v587, %v1513
    %v2098 = vsel %vm1515, %v2097, %v2096
    %v2099 = vperm.slane %v588, %v1517
    %v2100 = vsel %vm1519, %v2099, %v2098
    %v2101 = vperm.slane %v589, %v1521
    %v2102 = vsel %vm1523, %v2101, %v2100
    %v2103 = vperm.slane %v590, %v1525
    %v2104 = vsel %vm1527, %v2103, %v2102
    %v2105 = vperm.slane %v591, %v1529
    %v2106 = vsel %vm1531, %v2105, %v2104
    %v2107 = vperm.slane %v592, %v1533
    %v2108 = vsel %vm1535, %v2107, %v2106
    %v2109 = vperm.slane %v593, %v1537
    %v2110 = vsel %vm1539, %v2109, %v2108
    %v2111 = vperm.slane %v594, %v1541
    %v2112 = vsel %vm1543, %v2111, %v2110
    %v2113 = vperm.slane %v595, %v1545
    %v2114 = vsel %vm1547, %v2113, %v2112
    %v2115 = vperm.slane %v596, %v1549
    %v2116 = vsel %vm1551, %v2115, %v2114
    %v2117 = vperm.slane %v597, %v1553
    %v2118 = vsel %vm1555, %v2117, %v2116
    %v2119 = vperm.slane %v598, %v1495
    %v2120 = vperm.slane %v599, %v1497
    %v2121 = vsel %vm1499, %v2120, %v2119
    %v2122 = vperm.slane %v600, %v1501
    %v2123 = vsel %vm1503, %v2122, %v2121
    %v2124 = vperm.slane %v601, %v1505
    %v2125 = vsel %vm1507, %v2124, %v2123
    %v2126 = vperm.slane %v602, %v1509
    %v2127 = vsel %vm1511, %v2126, %v2125
    %v2128 = vperm.slane %v603, %v1513
    %v2129 = vsel %vm1515, %v2128, %v2127
    %v2130 = vperm.slane %v604, %v1517
    %v2131 = vsel %vm1519, %v2130, %v2129
    %v2132 = vperm.slane %v605, %v1521
    %v2133 = vsel %vm1523, %v2132, %v2131
    %v2134 = vperm.slane %v606, %v1525
    %v2135 = vsel %vm1527, %v2134, %v2133
    %v2136 = vperm.slane %v607, %v1529
    %v2137 = vsel %vm1531, %v2136, %v2135
    %v2138 = vperm.slane %v608, %v1533
    %v2139 = vsel %vm1535, %v2138, %v2137
    %v2140 = vperm.slane %v609, %v1537
    %v2141 = vsel %vm1539, %v2140, %v2139
    %v2142 = vperm.slane %v610, %v1541
    %v2143 = vsel %vm1543, %v2142, %v2141
    %v2144 = vperm.slane %v611, %v1545
    %v2145 = vsel %vm1547, %v2144, %v2143
    %v2146 = vperm.slane %v612, %v1549
    %v2147 = vsel %vm1551, %v2146, %v2145
    %v2148 = vperm.slane %v613, %v1553
    %v2149 = vsel %vm1555, %v2148, %v2147
    %v2150 = vperm.slane %v614, %v1495
    %v2151 = vperm.slane %v615, %v1497
    %v2152 = vsel %vm1499, %v2151, %v2150
    %v2153 = vperm.slane %v616, %v1501
    %v2154 = vsel %vm1503, %v2153, %v2152
    %v2155 = vperm.slane %v617, %v1505
    %v2156 = vsel %vm1507, %v2155, %v2154
    %v2157 = vperm.slane %v618, %v1509
    %v2158 = vsel %vm1511, %v2157, %v2156
    %v2159 = vperm.slane %v619, %v1513
    %v2160 = vsel %vm1515, %v2159, %v2158
    %v2161 = vperm.slane %v620, %v1517
    %v2162 = vsel %vm1519, %v2161, %v2160
    %v2163 = vperm.slane %v621, %v1521
    %v2164 = vsel %vm1523, %v2163, %v2162
    %v2165 = vperm.slane %v622, %v1525
    %v2166 = vsel %vm1527, %v2165, %v2164
    %v2167 = vperm.slane %v623, %v1529
    %v2168 = vsel %vm1531, %v2167, %v2166
    %v2169 = vperm.slane %v624, %v1533
    %v2170 = vsel %vm1535, %v2169, %v2168
    %v2171 = vperm.slane %v625, %v1537
    %v2172 = vsel %vm1539, %v2171, %v2170
    %v2173 = vperm.slane %v626, %v1541
    %v2174 = vsel %vm1543, %v2173, %v2172
    %v2175 = vperm.slane %v627, %v1545
    %v2176 = vsel %vm1547, %v2175, %v2174
    %v2177 = vperm.slane %v628, %v1549
    %v2178 = vsel %vm1551, %v2177, %v2176
    %v2179 = vperm.slane %v629, %v1553
    %v2180 = vsel %vm1555, %v2179, %v2178
    %v2181 = vperm.slane %v630, %v1495
    %v2182 = vperm.slane %v631, %v1497
    %v2183 = vsel %vm1499, %v2182, %v2181
    %v2184 = vperm.slane %v632, %v1501
    %v2185 = vsel %vm1503, %v2184, %v2183
    %v2186 = vperm.slane %v633, %v1505
    %v2187 = vsel %vm1507, %v2186, %v2185
    %v2188 = vperm.slane %v634, %v1509
    %v2189 = vsel %vm1511, %v2188, %v2187
    %v2190 = vperm.slane %v635, %v1513
    %v2191 = vsel %vm1515, %v2190, %v2189
    %v2192 = vperm.slane %v636, %v1517
    %v2193 = vsel %vm1519, %v2192, %v2191
    %v2194 = vperm.slane %v637, %v1521
    %v2195 = vsel %vm1523, %v2194, %v2193
    %v2196 = vperm.slane %v638, %v1525
    %v2197 = vsel %vm1527, %v2196, %v2195
    %v2198 = vperm.slane %v639, %v1529
    %v2199 = vsel %vm1531, %v2198, %v2197
    %v2200 = vperm.slane %v640, %v1533
    %v2201 = vsel %vm1535, %v2200, %v2199
    %v2202 = vperm.slane %v641, %v1537
    %v2203 = vsel %vm1539, %v2202, %v2201
    %v2204 = vperm.slane %v642, %v1541
    %v2205 = vsel %vm1543, %v2204, %v2203
    %v2206 = vperm.slane %v643, %v1545
    %v2207 = vsel %vm1547, %v2206, %v2205
    %v2208 = vperm.slane %v644, %v1549
    %v2209 = vsel %vm1551, %v2208, %v2207
    %v2210 = vperm.slane %v645, %v1553
    %v2211 = vsel %vm1555, %v2210, %v2209
    %v2212 = vperm.slane %v646, %v1495
    %v2213 = vperm.slane %v647, %v1497
    %v2214 = vsel %vm1499, %v2213, %v2212
    %v2215 = vperm.slane %v648, %v1501
    %v2216 = vsel %vm1503, %v2215, %v2214
    %v2217 = vperm.slane %v649, %v1505
    %v2218 = vsel %vm1507, %v2217, %v2216
    %v2219 = vperm.slane %v650, %v1509
    %v2220 = vsel %vm1511, %v2219, %v2218
    %v2221 = vperm.slane %v651, %v1513
    %v2222 = vsel %vm1515, %v2221, %v2220
    %v2223 = vperm.slane %v652, %v1517
    %v2224 = vsel %vm1519, %v2223, %v2222
    %v2225 = vperm.slane %v653, %v1521
    %v2226 = vsel %vm1523, %v2225, %v2224
    %v2227 = vperm.slane %v654, %v1525
    %v2228 = vsel %vm1527, %v2227, %v2226
    %v2229 = vperm.slane %v655, %v1529
    %v2230 = vsel %vm1531, %v2229, %v2228
    %v2231 = vperm.slane %v656, %v1533
    %v2232 = vsel %vm1535, %v2231, %v2230
    %v2233 = vperm.slane %v657, %v1537
    %v2234 = vsel %vm1539, %v2233, %v2232
    %v2235 = vperm.slane %v658, %v1541
    %v2236 = vsel %vm1543, %v2235, %v2234
    %v2237 = vperm.slane %v659, %v1545
    %v2238 = vsel %vm1547, %v2237, %v2236
    %v2239 = vperm.slane %v660, %v1549
    %v2240 = vsel %vm1551, %v2239, %v2238
    %v2241 = vperm.slane %v661, %v1553
    %v2242 = vsel %vm1555, %v2241, %v2240
    %v2243 = vsel %vm1774, %v2149, %v2025
    %v2244 = vsel %vm1774, %v2180, %v2056
    %v2245 = vsel %vm1774, %v2211, %v2087
    %v2246 = vsel %vm1774, %v2242, %v2118
    %2251 = vmatpush.msra.mxu0 %v1317
    %2252 = vmatpush.msra.mxu0 %v1316
    %2253 = vmatpush.msra.mxu0 %v1315
    %2254 = vmatpush.msra.mxu0 %v1314
    %2255 = vmatpush.msra.mxu0 %v1313
    %2256 = vmatpush.msra.mxu0 %v1312
    %2257 = vmatpush.msra.mxu0 %v1311
    %2258 = vmatpush.msra.mxu0 %v1310
    %2259 = vmatpush.msra.mxu0 %v1309
    %2260 = vmatpush.msra.mxu0 %v1308
    %2261 = vmatpush.msra.mxu0 %v1307
    %2262 = vmatpush.msra.mxu0 %v1306
    %2263 = vmatpush.msra.mxu0 %v1305
    %2264 = vmatpush.msra.mxu0 %v1304
    %2265 = vmatpush.msra.mxu0 %v1303
    %2266 = vmatpush.msra.mxu0 %v1302
    %2267 = vmatmul.f32.gmra.mxu0 %v2243
    %v2268 = vpop.f32.mrf.mxu0
    %v2269 = vadd.f32 %v1865, %v2268
    %2270 = vdwg.mxu0
    %2271 = vmatpush.msra.mxu0 %v1333
    %2272 = vmatpush.msra.mxu0 %v1332
    %2273 = vmatpush.msra.mxu0 %v1331
    %2274 = vmatpush.msra.mxu0 %v1330
    %2275 = vmatpush.msra.mxu0 %v1329
    %2276 = vmatpush.msra.mxu0 %v1328
    %2277 = vmatpush.msra.mxu0 %v1327
    %2278 = vmatpush.msra.mxu0 %v1326
    %2279 = vmatpush.msra.mxu0 %v1325
    %2280 = vmatpush.msra.mxu0 %v1324
    %2281 = vmatpush.msra.mxu0 %v1323
    %2282 = vmatpush.msra.mxu0 %v1322
    %2283 = vmatpush.msra.mxu0 %v1321
    %2284 = vmatpush.msra.mxu0 %v1320
    %2285 = vmatpush.msra.mxu0 %v1319
    %2286 = vmatpush.msra.mxu0 %v1318
    %2287 = vmatmul.f32.gmra.mxu0 %v2244
    %v2288 = vpop.f32.mrf.mxu0
    %v2289 = vadd.f32 %v2269, %v2288
    %2290 = vdwg.mxu0
    %2291 = vmatpush.msra.mxu0 %v1349
    %2292 = vmatpush.msra.mxu0 %v1348
    %2293 = vmatpush.msra.mxu0 %v1347
    %2294 = vmatpush.msra.mxu0 %v1346
    %2295 = vmatpush.msra.mxu0 %v1345
    %2296 = vmatpush.msra.mxu0 %v1344
    %2297 = vmatpush.msra.mxu0 %v1343
    %2298 = vmatpush.msra.mxu0 %v1342
    %2299 = vmatpush.msra.mxu0 %v1341
    %2300 = vmatpush.msra.mxu0 %v1340
    %2301 = vmatpush.msra.mxu0 %v1339
    %2302 = vmatpush.msra.mxu0 %v1338
    %2303 = vmatpush.msra.mxu0 %v1337
    %2304 = vmatpush.msra.mxu0 %v1336
    %2305 = vmatpush.msra.mxu0 %v1335
    %2306 = vmatpush.msra.mxu0 %v1334
    %2307 = vmatmul.f32.gmra.mxu0 %v2245
    %v2308 = vpop.f32.mrf.mxu0
    %v2309 = vadd.f32 %v2289, %v2308
    %2310 = vdwg.mxu0
    %2311 = vmatpush.msra.mxu0 %v1365
    %2312 = vmatpush.msra.mxu0 %v1364
    %2313 = vmatpush.msra.mxu0 %v1363
    %2314 = vmatpush.msra.mxu0 %v1362
    %2315 = vmatpush.msra.mxu0 %v1361
    %2316 = vmatpush.msra.mxu0 %v1360
    %2317 = vmatpush.msra.mxu0 %v1359
    %2318 = vmatpush.msra.mxu0 %v1358
    %2319 = vmatpush.msra.mxu0 %v1357
    %2320 = vmatpush.msra.mxu0 %v1356
    %2321 = vmatpush.msra.mxu0 %v1355
    %2322 = vmatpush.msra.mxu0 %v1354
    %2323 = vmatpush.msra.mxu0 %v1353
    %2324 = vmatpush.msra.mxu0 %v1352
    %2325 = vmatpush.msra.mxu0 %v1351
    %2326 = vmatpush.msra.mxu0 %v1350
    %2327 = vmatmul.f32.gmra.mxu0 %v2246
    %v2328 = vpop.f32.mrf.mxu0
    %v2329 = vadd.f32 %v2309, %v2328
    %2330 = vdwg.mxu0
    %2331 = vst [vmem:[#allocation2] sm:$0x3] %v2329
    %2332 = vst [vmem:[#allocation4] sm:$0x3] %v1861
    // Predicated region
    $region18: #{tpu_custom_call.1} parent=1 // pred_check
      _
    $region19: #{tpu_custom_call.1} parent=1 // pred_check_branch
      %2334 = sbr.rel (0) target = $region21
    $region20: #{tpu_custom_call.1} parent=1 // pred_region
      %2336 = vsyncadd [#allocation3], 0
      %s2338 = sshll.u32 [#allocation2], 4
      %s2339 = int_to_ptr.vmem [resolvable:$true] %s2338
      %s2340 = sshll.u32 %s4, 4
      %s2341 = int_to_ptr.hbm [resolvable:$true] %s2340
      %2343 = dma.vmem_to_hbm [thread:$0]  %s2339, 32, %s2341, [#allocation3]
    $region21: #{tpu_custom_call.1} parent=1 // pred_fallthru
      _
    // Predicated region
    $region22: #{tpu_custom_call.1} parent=1 // pred_check
      _
    $region23: #{tpu_custom_call.1} parent=1 // pred_check_branch
      %2345 = sbr.rel (0) target = $region25
    $region24: #{tpu_custom_call.1} parent=1 // pred_region
      %2347 = vsyncadd [#allocation5], 0
      %s2349 = sshll.u32 [#allocation4], 4
      %s2350 = int_to_ptr.vmem [resolvable:$true] %s2349
      %s2351 = sshll.u32 %s5, 4
      %s2352 = int_to_ptr.hbm [resolvable:$true] %s2351
      %2354 = dma.vmem_to_hbm [thread:$0]  %s2350, 32, %s2352, [#allocation5]
    $region25: #{tpu_custom_call.1} parent=1 // pred_fallthru
      _
    // Predicated region
    $region26: #{tpu_custom_call.1} parent=1 // pred_check
      _
    $region27: #{tpu_custom_call.1} parent=1 // pred_check_branch
      %2356 = sbr.rel (0) target = $region29
    $region28: #{tpu_custom_call.1} parent=1 // pred_region
      %2358 = dma.done [#allocation3], 32
    $region29: #{tpu_custom_call.1} parent=1 // pred_fallthru
      _
    // Predicated region
    $region30: #{tpu_custom_call.1} parent=1 // pred_check
      _
    $region31: #{tpu_custom_call.1} parent=1 // pred_check_branch
      %2360 = sbr.rel (0) target = $region33
    $region32: #{tpu_custom_call.1} parent=1 // pred_region
      %2362 = dma.done [#allocation5], 32
    $region33: #{tpu_custom_call.1} parent=1 // pred_fallthru
      _
    %2363 = vsyncpa [#allocation3], 1
    %2364 = vsyncpa [#allocation5], 1

</llo_original>
